<compile_context>
chip_gen: v5e
topology: v5e:2x2
jax: 0.10.0
libtpu: 0.0.40
codegen_flags: <defaults>
</compile_context>

<pallas_src>
import functools

import jax
import jax.numpy as jnp
from jax.experimental import pallas as pl
from jax.experimental.pallas import tpu as pltpu

_LANES = 128


def lstm_reg_kernel(x_ref, p_ref, out_ref, *, seq_len, batch, hidden, offs):
    """2-layer LSTM (PyTorch gate order i,f,g,o) + Linear head.

    x_ref   : (S*Bp, I) flattened input.
    p_ref   : (R, 128) packed parameter buffer (see _pack_params for layout).
    out_ref : (S*Bp, 128) lane-padded output (column 0 = regression output).
    """
    H = hidden
    B = batch
    I = x_ref.shape[1]

    # Static slices of the packed parameter buffer (every block starts on an
    # 8-row boundary, so these are free views -> single-vreg loads).
    wih0 = p_ref[offs["wih0"]:offs["wih0"] + I, :]          # (I, 4H)   pre-scaled
    whh0 = p_ref[offs["whh0"]:offs["whh0"] + H, :]          # (H, 4H)   pre-scaled
    b0 = p_ref[offs["b0"]:offs["b0"] + 1, :]                # (1, 4H)   pre-scaled
    w1s = p_ref[offs["w1s"]:offs["w1s"] + 2 * H, :]         # (2H, 4H)  [wih1; whh1]
    b1 = p_ref[offs["b1"]:offs["b1"] + B, :]                # (B, 4H)   replicated rows
    wreg = p_ref[offs["wreg"]:offs["wreg"] + H, :]          # (H, 128)  lane-padded
    breg = p_ref[offs["breg"]:offs["breg"] + 1, :]          # (1, 128)  lane-padded

    # Layer-0 input projection for ALL timesteps in one well-filled MXU call;
    # only the recurrent h-path matmul remains inside the serial loop.
    gates_x0 = (jnp.dot(x_ref[...], wih0,
                        preferred_element_type=jnp.float32) + b0)   # (S*B, 4H)

    def gate_act(gates):
        # Single EUP push per cell: i/f/o columns hold z/2 (weights pre-scaled
        # by 0.5), so sigmoid(z) = 0.5*tanh(z/2) + 0.5; the g quarter is raw.
        t = jnp.tanh(gates)
        i = 0.5 * t[:, 0 * H:1 * H] + 0.5
        f = 0.5 * t[:, 1 * H:2 * H] + 0.5
        g = t[:, 2 * H:3 * H]
        o = 0.5 * t[:, 3 * H:4 * H] + 0.5
        return i, f, g, o

    # Zero initial hidden / cell states (PyTorch default), carried in registers.
    h1 = jnp.zeros((B, H), jnp.float32)
    c1 = jnp.zeros((B, H), jnp.float32)
    h2 = jnp.zeros((B, H), jnp.float32)
    c2 = jnp.zeros((B, H), jnp.float32)

    h2_steps = []
    # Static unroll over the small, trace-time-known sequence so the LLO
    # scheduler can overlap EUP/MXU work across adjacent timesteps.
    # TODO(synk): for seq_len beyond ~16-32, switch to lax.fori_loop(unroll=2-4)
    # with an (S*Bp, H) VMEM scratch for h2 to bound vreg live ranges.
    for t in range(seq_len):
        # ---- layer 0: recurrent path only (input path precomputed above) ----
        g0 = gates_x0[t * B:(t + 1) * B, :] + jnp.dot(
            h1, whh0, preferred_element_type=jnp.float32)
        i0, f0, gg0, o0 = gate_act(g0)
        c1 = f0 * c1 + i0 * gg0
        h1 = o0 * jnp.tanh(c1)

        # ---- layer 1: single fused MXU call over stacked [wih1; whh1] ----
        h12 = jnp.concatenate([h1, h2], axis=1)              # (B, 2H)
        g1 = jnp.dot(h12, w1s, preferred_element_type=jnp.float32) + b1
        i1, f1, gg1, o1 = gate_act(g1)
        c2 = f1 * c2 + i1 * gg1
        h2 = o1 * jnp.tanh(c2)

        h2_steps.append(h2)

    # Regression head once for all timesteps; lane-dense (S*B, 128) store.
    h2_all = jnp.concatenate(h2_steps, axis=0)                # (S*B, H)
    y = (jnp.dot(h2_all, wreg, preferred_element_type=jnp.float32)
         + breg)                                              # (S*B, 128)
    out_ref[...] = y.astype(out_ref.dtype)


def _pack_params(params, Bp):
    """Pre-scale i/f/o columns by 0.5 (tanh identity), stack layer-1 weights,
    lane-pad the head, and pack everything into one sublane-aligned (R, 128)
    f32 buffer -> a single parameter DMA."""
    H = params["whh0"].shape[0]
    G = 4 * H
    O = params["wreg"].shape[1]
    assert G == _LANES, "packing layout assumes 4*hidden == 128"

    # Gate order is (i, f, g, o): scale i, f, o columns by 0.5; leave g.
    scale = jnp.concatenate([
        jnp.full((2 * H,), 0.5, jnp.float32),
        jnp.ones((H,), jnp.float32),
        jnp.full((H,), 0.5, jnp.float32)])

    wih0 = params["wih0"] * scale
    whh0 = params["whh0"] * scale
    b0 = params["b0"] * scale                                         # (1, G)
    w1s = jnp.concatenate([params["wih1"], params["whh1"]], axis=0) * scale
    b1 = jnp.broadcast_to(params["b1"] * scale, (Bp, G))              # (Bp, G)
    wreg = jnp.pad(params["wreg"], ((0, 0), (0, _LANES - O)))         # (H, 128)
    breg = jnp.pad(params["breg"], ((0, 0), (0, _LANES - O)))         # (1, 128)

    blocks = dict(wih0=wih0, whh0=whh0, b0=b0, w1s=w1s, b1=b1,
                  wreg=wreg, breg=breg)
    offs, rows, pieces = {}, 0, []
    for name, arr in blocks.items():
        offs[name] = rows
        r = arr.shape[0]
        rp = ((r + 7) // 8) * 8          # sublane-align every block start
        if rp != r:
            arr = jnp.pad(arr, ((0, rp - r), (0, 0)))
        pieces.append(arr)
        rows += rp
    return jnp.concatenate(pieces, axis=0), offs


@jax.jit
def lstm_reg_forward(x, params):
    """x: (S, B, I) float32 -> (S, B, O) float32."""
    S, B, I = x.shape
    H = params["whh0"].shape[0]
    O = params["wreg"].shape[1]

    # Pad batch to the f32 sublane count (8) so per-step vreg ops are unmasked.
    Bp = ((B + 7) // 8) * 8
    if Bp != B:
        x = jnp.pad(x, ((0, 0), (0, Bp - B), (0, 0)))
    x2d = x.reshape(S * Bp, I)

    pbuf, offs = _pack_params(params, Bp)

    kernel = functools.partial(lstm_reg_kernel, seq_len=S, batch=Bp,
                               hidden=H, offs=offs)
    vmem_spec = pl.BlockSpec(memory_space=pltpu.MemorySpace.VMEM)
    out2d = pl.pallas_call(
        kernel,
        out_shape=jax.ShapeDtypeStruct((S * Bp, _LANES), x.dtype),
        in_specs=[vmem_spec, vmem_spec],
        out_specs=vmem_spec,
    )(x2d, pbuf)

    # TODO(synk): on v7x with Bp >= 16, add a leading batch grid axis marked
    # "parallel" (or core_map over the 2-core TC mesh) to use both TensorCores;
    # at Bp=8 a grid would only add per-step overhead.
    return out2d.reshape(S, Bp, _LANES)[:, :B, :O]


def init_params(key, input_size, hidden_size, output_size):
    """PyTorch-style uniform(-1/sqrt(H), 1/sqrt(H)) init; weights stored transposed."""
    H = hidden_size
    bound = 1.0 / jnp.sqrt(jnp.float32(H))
    keys = jax.random.split(key, 12)

    def u(k, shape):
        return jax.random.uniform(k, shape, jnp.float32, -bound, bound)

    # layer 0: W_ih (4H, I), W_hh (4H, H) -> stored as (I, 4H), (H, 4H)
    wih0 = u(keys[0], (input_size, 4 * H))
    whh0 = u(keys[1], (H, 4 * H))
    b0 = (u(keys[2], (4 * H,)) + u(keys[3], (4 * H,))).reshape(1, 4 * H)
    # layer 1: input is H
    wih1 = u(keys[4], (H, 4 * H))
    whh1 = u(keys[5], (H, 4 * H))
    b1 = (u(keys[6], (4 * H,)) + u(keys[7], (4 * H,))).reshape(1, 4 * H)
    # Linear reg: (O, H) -> stored as (H, O)
    wreg = u(keys[8], (H, output_size))
    breg = u(keys[9], (output_size,)).reshape(1, output_size)

    return dict(wih0=wih0, whh0=whh0, b0=b0,
                wih1=wih1, whh1=whh1, b1=b1,
                wreg=wreg, breg=breg)


def lstm_reg_reference(x, params):
    """Pure-JAX reference (mirrors PyTorch nn.LSTM + nn.Linear semantics)."""
    H = params["whh0"].shape[0]

    def cell(x_t, h, c, w_ih, w_hh, b):
        g = x_t @ w_ih + h @ w_hh + b
        i = jax.nn.sigmoid(g[:, 0 * H:1 * H])
        f = jax.nn.sigmoid(g[:, 1 * H:2 * H])
        gg = jnp.tanh(g[:, 2 * H:3 * H])
        o = jax.nn.sigmoid(g[:, 3 * H:4 * H])
        c = f * c + i * gg
        h = o * jnp.tanh(c)
        return h, c

    S, B, _ = x.shape
    h1 = jnp.zeros((B, H), jnp.float32)
    c1 = jnp.zeros((B, H), jnp.float32)
    h2 = jnp.zeros((B, H), jnp.float32)
    c2 = jnp.zeros((B, H), jnp.float32)
    outs = []
    for t in range(S):
        h1, c1 = cell(x[t], h1, c1, params["wih0"], params["whh0"], params["b0"])
        h2, c2 = cell(h1, h2, c2, params["wih1"], params["whh1"], params["b1"])
        outs.append(h2 @ params["wreg"] + params["breg"])
    return jnp.stack(outs, axis=0)


if __name__ == "__main__":
    SEQ, BATCH = 8, 2
    INPUT_SIZE, HIDDEN_SIZE, OUTPUT_SIZE = 16, 32, 1

    key = jax.random.PRNGKey(0)
    kx, kp = jax.random.split(key)
    x = jax.random.normal(kx, (SEQ, BATCH, INPUT_SIZE), jnp.float32)
    params = init_params(kp, INPUT_SIZE, HIDDEN_SIZE, OUTPUT_SIZE)

    out = lstm_reg_forward(x, params)
    out = jax.block_until_ready(out)

    ref = lstm_reg_reference(x, params)
    assert out.shape == (SEQ, BATCH, OUTPUT_SIZE), out.shape
    assert jnp.max(jnp.abs(out - ref)) < 1e-4, float(jnp.max(jnp.abs(out - ref)))

    print("KERNEL_OK")
</pallas_src>

<mosaic_0001>
module attributes {stable_mosaic.version = 11 : i64} {
  func.func @lstm_reg_kernel(%arg0: memref<64x16xf32, #tpu.memory_space<vmem>>, %arg1: memref<168x128xf32, #tpu.memory_space<vmem>>, %arg2: memref<64x128xf32, #tpu.memory_space<vmem>>) attributes {dimension_semantics = [], scalar_prefetch = 0 : i64, scratch_operands = 0 : i64, tpu.core_type = #tpu.core_type<tc>} {
    %c0 = arith.constant 0 : index
    %c0_0 = arith.constant 0 : index
    %0 = vector.load %arg1[%c0, %c0_0] : memref<168x128xf32, #tpu.memory_space<vmem>>, vector<16x128xf32>
    %c16 = arith.constant 16 : index
    %c0_1 = arith.constant 0 : index
    %1 = vector.load %arg1[%c16, %c0_1] : memref<168x128xf32, #tpu.memory_space<vmem>>, vector<32x128xf32>
    %c48 = arith.constant 48 : index
    %c0_2 = arith.constant 0 : index
    %2 = vector.load %arg1[%c48, %c0_2] : memref<168x128xf32, #tpu.memory_space<vmem>>, vector<1x128xf32>
    %c56 = arith.constant 56 : index
    %c0_3 = arith.constant 0 : index
    %3 = vector.load %arg1[%c56, %c0_3] : memref<168x128xf32, #tpu.memory_space<vmem>>, vector<64x128xf32>
    %c120 = arith.constant 120 : index
    %c0_4 = arith.constant 0 : index
    %4 = vector.load %arg1[%c120, %c0_4] : memref<168x128xf32, #tpu.memory_space<vmem>>, vector<8x128xf32>
    %c128 = arith.constant 128 : index
    %c0_5 = arith.constant 0 : index
    %5 = vector.load %arg1[%c128, %c0_5] : memref<168x128xf32, #tpu.memory_space<vmem>>, vector<32x128xf32>
    %c160 = arith.constant 160 : index
    %c0_6 = arith.constant 0 : index
    %6 = vector.load %arg1[%c160, %c0_6] : memref<168x128xf32, #tpu.memory_space<vmem>>, vector<1x128xf32>
    %c0_7 = arith.constant 0 : index
    %c0_8 = arith.constant 0 : index
    %7 = vector.load %arg0[%c0_7, %c0_8] : memref<64x16xf32, #tpu.memory_space<vmem>>, vector<64x16xf32>
    %cst = arith.constant dense<0.000000e+00> : vector<64x128xf32>
    %8 = tpu.matmul %7, %0, %cst {dimension_numbers = #tpu.dot_dimension_numbers<[1], [0], [0], [1], [0, 0, 1, 1], [], []>} : vector<64x16xf32>, vector<16x128xf32>, vector<64x128xf32> -> vector<64x128xf32>
    %9 = vector.broadcast %2 : vector<1x128xf32> to vector<64x128xf32>
    %10 = arith.addf %8, %9 : vector<64x128xf32>
    %cst_9 = arith.constant 0.000000e+00 : f32
    %11 = vector.broadcast %cst_9 : f32 to vector<8x32xf32>
    %cst_10 = arith.constant 0.000000e+00 : f32
    %12 = vector.broadcast %cst_10 : f32 to vector<8x32xf32>
    %cst_11 = arith.constant 0.000000e+00 : f32
    %13 = vector.broadcast %cst_11 : f32 to vector<8x32xf32>
    %cst_12 = arith.constant 0.000000e+00 : f32
    %14 = vector.broadcast %cst_12 : f32 to vector<8x32xf32>
    %15 = vector.extract_strided_slice %10 {offsets = [0, 0], sizes = [8, 128], strides = [1, 1]} : vector<64x128xf32> to vector<8x128xf32>
    %cst_13 = arith.constant dense<0.000000e+00> : vector<8x128xf32>
    %16 = tpu.matmul %11, %1, %cst_13 {dimension_numbers = #tpu.dot_dimension_numbers<[1], [0], [0], [1], [0, 0, 1, 1], [], []>} : vector<8x32xf32>, vector<32x128xf32>, vector<8x128xf32> -> vector<8x128xf32>
    %17 = arith.addf %15, %16 : vector<8x128xf32>
    %18 = math.tanh %17 : vector<8x128xf32>
    %19 = vector.extract_strided_slice %18 {offsets = [0, 0], sizes = [8, 32], strides = [1, 1]} : vector<8x128xf32> to vector<8x32xf32>
    %cst_14 = arith.constant 5.000000e-01 : f32
    %20 = vector.broadcast %cst_14 : f32 to vector<8x32xf32>
    %21 = arith.mulf %20, %19 : vector<8x32xf32>
    %cst_15 = arith.constant 5.000000e-01 : f32
    %22 = vector.broadcast %cst_15 : f32 to vector<8x32xf32>
    %23 = arith.addf %21, %22 : vector<8x32xf32>
    %24 = vector.extract_strided_slice %18 {offsets = [0, 32], sizes = [8, 32], strides = [1, 1]} : vector<8x128xf32> to vector<8x32xf32>
    %cst_16 = arith.constant 5.000000e-01 : f32
    %25 = vector.broadcast %cst_16 : f32 to vector<8x32xf32>
    %26 = arith.mulf %25, %24 : vector<8x32xf32>
    %cst_17 = arith.constant 5.000000e-01 : f32
    %27 = vector.broadcast %cst_17 : f32 to vector<8x32xf32>
    %28 = arith.addf %26, %27 : vector<8x32xf32>
    %29 = vector.extract_strided_slice %18 {offsets = [0, 64], sizes = [8, 32], strides = [1, 1]} : vector<8x128xf32> to vector<8x32xf32>
    %30 = vector.extract_strided_slice %18 {offsets = [0, 96], sizes = [8, 32], strides = [1, 1]} : vector<8x128xf32> to vector<8x32xf32>
    %cst_18 = arith.constant 5.000000e-01 : f32
    %31 = vector.broadcast %cst_18 : f32 to vector<8x32xf32>
    %32 = arith.mulf %31, %30 : vector<8x32xf32>
    %cst_19 = arith.constant 5.000000e-01 : f32
    %33 = vector.broadcast %cst_19 : f32 to vector<8x32xf32>
    %34 = arith.addf %32, %33 : vector<8x32xf32>
    %35 = arith.mulf %28, %12 : vector<8x32xf32>
    %36 = arith.mulf %23, %29 : vector<8x32xf32>
    %37 = arith.addf %35, %36 : vector<8x32xf32>
    %38 = math.tanh %37 : vector<8x32xf32>
    %39 = arith.mulf %34, %38 : vector<8x32xf32>
    %40 = tpu.concatenate %39, %13 in 1 : vector<8x32xf32>, vector<8x32xf32> -> vector<8x64xf32>
    %cst_20 = arith.constant dense<0.000000e+00> : vector<8x128xf32>
    %41 = tpu.matmul %40, %3, %cst_20 {dimension_numbers = #tpu.dot_dimension_numbers<[1], [0], [0], [1], [0, 0, 1, 1], [], []>} : vector<8x64xf32>, vector<64x128xf32>, vector<8x128xf32> -> vector<8x128xf32>
    %42 = arith.addf %41, %4 : vector<8x128xf32>
    %43 = math.tanh %42 : vector<8x128xf32>
    %44 = vector.extract_strided_slice %43 {offsets = [0, 0], sizes = [8, 32], strides = [1, 1]} : vector<8x128xf32> to vector<8x32xf32>
    %cst_21 = arith.constant 5.000000e-01 : f32
    %45 = vector.broadcast %cst_21 : f32 to vector<8x32xf32>
    %46 = arith.mulf %45, %44 : vector<8x32xf32>
    %cst_22 = arith.constant 5.000000e-01 : f32
    %47 = vector.broadcast %cst_22 : f32 to vector<8x32xf32>
    %48 = arith.addf %46, %47 : vector<8x32xf32>
    %49 = vector.extract_strided_slice %43 {offsets = [0, 32], sizes = [8, 32], strides = [1, 1]} : vector<8x128xf32> to vector<8x32xf32>
    %cst_23 = arith.constant 5.000000e-01 : f32
    %50 = vector.broadcast %cst_23 : f32 to vector<8x32xf32>
    %51 = arith.mulf %50, %49 : vector<8x32xf32>
    %cst_24 = arith.constant 5.000000e-01 : f32
    %52 = vector.broadcast %cst_24 : f32 to vector<8x32xf32>
    %53 = arith.addf %51, %52 : vector<8x32xf32>
    %54 = vector.extract_strided_slice %43 {offsets = [0, 64], sizes = [8, 32], strides = [1, 1]} : vector<8x128xf32> to vector<8x32xf32>
    %55 = vector.extract_strided_slice %43 {offsets = [0, 96], sizes = [8, 32], strides = [1, 1]} : vector<8x128xf32> to vector<8x32xf32>
    %cst_25 = arith.constant 5.000000e-01 : f32
    %56 = vector.broadcast %cst_25 : f32 to vector<8x32xf32>
    %57 = arith.mulf %56, %55 : vector<8x32xf32>
    %cst_26 = arith.constant 5.000000e-01 : f32
    %58 = vector.broadcast %cst_26 : f32 to vector<8x32xf32>
    %59 = arith.addf %57, %58 : vector<8x32xf32>
    %60 = arith.mulf %53, %14 : vector<8x32xf32>
    %61 = arith.mulf %48, %54 : vector<8x32xf32>
    %62 = arith.addf %60, %61 : vector<8x32xf32>
    %63 = math.tanh %62 : vector<8x32xf32>
    %64 = arith.mulf %59, %63 : vector<8x32xf32>
    %65 = vector.extract_strided_slice %10 {offsets = [8, 0], sizes = [8, 128], strides = [1, 1]} : vector<64x128xf32> to vector<8x128xf32>
    %cst_27 = arith.constant dense<0.000000e+00> : vector<8x128xf32>
    %66 = tpu.matmul %39, %1, %cst_27 {dimension_numbers = #tpu.dot_dimension_numbers<[1], [0], [0], [1], [0, 0, 1, 1], [], []>} : vector<8x32xf32>, vector<32x128xf32>, vector<8x128xf32> -> vector<8x128xf32>
    %67 = arith.addf %65, %66 : vector<8x128xf32>
    %68 = math.tanh %67 : vector<8x128xf32>
    %69 = vector.extract_strided_slice %68 {offsets = [0, 0], sizes = [8, 32], strides = [1, 1]} : vector<8x128xf32> to vector<8x32xf32>
    %cst_28 = arith.constant 5.000000e-01 : f32
    %70 = vector.broadcast %cst_28 : f32 to vector<8x32xf32>
    %71 = arith.mulf %70, %69 : vector<8x32xf32>
    %cst_29 = arith.constant 5.000000e-01 : f32
    %72 = vector.broadcast %cst_29 : f32 to vector<8x32xf32>
    %73 = arith.addf %71, %72 : vector<8x32xf32>
    %74 = vector.extract_strided_slice %68 {offsets = [0, 32], sizes = [8, 32], strides = [1, 1]} : vector<8x128xf32> to vector<8x32xf32>
    %cst_30 = arith.constant 5.000000e-01 : f32
    %75 = vector.broadcast %cst_30 : f32 to vector<8x32xf32>
    %76 = arith.mulf %75, %74 : vector<8x32xf32>
    %cst_31 = arith.constant 5.000000e-01 : f32
    %77 = vector.broadcast %cst_31 : f32 to vector<8x32xf32>
    %78 = arith.addf %76, %77 : vector<8x32xf32>
    %79 = vector.extract_strided_slice %68 {offsets = [0, 64], sizes = [8, 32], strides = [1, 1]} : vector<8x128xf32> to vector<8x32xf32>
    %80 = vector.extract_strided_slice %68 {offsets = [0, 96], sizes = [8, 32], strides = [1, 1]} : vector<8x128xf32> to vector<8x32xf32>
    %cst_32 = arith.constant 5.000000e-01 : f32
    %81 = vector.broadcast %cst_32 : f32 to vector<8x32xf32>
    %82 = arith.mulf %81, %80 : vector<8x32xf32>
    %cst_33 = arith.constant 5.000000e-01 : f32
    %83 = vector.broadcast %cst_33 : f32 to vector<8x32xf32>
    %84 = arith.addf %82, %83 : vector<8x32xf32>
    %85 = arith.mulf %78, %37 : vector<8x32xf32>
    %86 = arith.mulf %73, %79 : vector<8x32xf32>
    %87 = arith.addf %85, %86 : vector<8x32xf32>
    %88 = math.tanh %87 : vector<8x32xf32>
    %89 = arith.mulf %84, %88 : vector<8x32xf32>
    %90 = tpu.concatenate %89, %64 in 1 : vector<8x32xf32>, vector<8x32xf32> -> vector<8x64xf32>
    %cst_34 = arith.constant dense<0.000000e+00> : vector<8x128xf32>
    %91 = tpu.matmul %90, %3, %cst_34 {dimension_numbers = #tpu.dot_dimension_numbers<[1], [0], [0], [1], [0, 0, 1, 1], [], []>} : vector<8x64xf32>, vector<64x128xf32>, vector<8x128xf32> -> vector<8x128xf32>
    %92 = arith.addf %91, %4 : vector<8x128xf32>
    %93 = math.tanh %92 : vector<8x128xf32>
    %94 = vector.extract_strided_slice %93 {offsets = [0, 0], sizes = [8, 32], strides = [1, 1]} : vector<8x128xf32> to vector<8x32xf32>
    %cst_35 = arith.constant 5.000000e-01 : f32
    %95 = vector.broadcast %cst_35 : f32 to vector<8x32xf32>
    %96 = arith.mulf %95, %94 : vector<8x32xf32>
    %cst_36 = arith.constant 5.000000e-01 : f32
    %97 = vector.broadcast %cst_36 : f32 to vector<8x32xf32>
    %98 = arith.addf %96, %97 : vector<8x32xf32>
    %99 = vector.extract_strided_slice %93 {offsets = [0, 32], sizes = [8, 32], strides = [1, 1]} : vector<8x128xf32> to vector<8x32xf32>
    %cst_37 = arith.constant 5.000000e-01 : f32
    %100 = vector.broadcast %cst_37 : f32 to vector<8x32xf32>
    %101 = arith.mulf %100, %99 : vector<8x32xf32>
    %cst_38 = arith.constant 5.000000e-01 : f32
    %102 = vector.broadcast %cst_38 : f32 to vector<8x32xf32>
    %103 = arith.addf %101, %102 : vector<8x32xf32>
    %104 = vector.extract_strided_slice %93 {offsets = [0, 64], sizes = [8, 32], strides = [1, 1]} : vector<8x128xf32> to vector<8x32xf32>
    %105 = vector.extract_strided_slice %93 {offsets = [0, 96], sizes = [8, 32], strides = [1, 1]} : vector<8x128xf32> to vector<8x32xf32>
    %cst_39 = arith.constant 5.000000e-01 : f32
    %106 = vector.broadcast %cst_39 : f32 to vector<8x32xf32>
    %107 = arith.mulf %106, %105 : vector<8x32xf32>
    %cst_40 = arith.constant 5.000000e-01 : f32
    %108 = vector.broadcast %cst_40 : f32 to vector<8x32xf32>
    %109 = arith.addf %107, %108 : vector<8x32xf32>
    %110 = arith.mulf %103, %62 : vector<8x32xf32>
    %111 = arith.mulf %98, %104 : vector<8x32xf32>
    %112 = arith.addf %110, %111 : vector<8x32xf32>
    %113 = math.tanh %112 : vector<8x32xf32>
    %114 = arith.mulf %109, %113 : vector<8x32xf32>
    %115 = vector.extract_strided_slice %10 {offsets = [16, 0], sizes = [8, 128], strides = [1, 1]} : vector<64x128xf32> to vector<8x128xf32>
    %cst_41 = arith.constant dense<0.000000e+00> : vector<8x128xf32>
    %116 = tpu.matmul %89, %1, %cst_41 {dimension_numbers = #tpu.dot_dimension_numbers<[1], [0], [0], [1], [0, 0, 1, 1], [], []>} : vector<8x32xf32>, vector<32x128xf32>, vector<8x128xf32> -> vector<8x128xf32>
    %117 = arith.addf %115, %116 : vector<8x128xf32>
    %118 = math.tanh %117 : vector<8x128xf32>
    %119 = vector.extract_strided_slice %118 {offsets = [0, 0], sizes = [8, 32], strides = [1, 1]} : vector<8x128xf32> to vector<8x32xf32>
    %cst_42 = arith.constant 5.000000e-01 : f32
    %120 = vector.broadcast %cst_42 : f32 to vector<8x32xf32>
    %121 = arith.mulf %120, %119 : vector<8x32xf32>
    %cst_43 = arith.constant 5.000000e-01 : f32
    %122 = vector.broadcast %cst_43 : f32 to vector<8x32xf32>
    %123 = arith.addf %121, %122 : vector<8x32xf32>
    %124 = vector.extract_strided_slice %118 {offsets = [0, 32], sizes = [8, 32], strides = [1, 1]} : vector<8x128xf32> to vector<8x32xf32>
    %cst_44 = arith.constant 5.000000e-01 : f32
    %125 = vector.broadcast %cst_44 : f32 to vector<8x32xf32>
    %126 = arith.mulf %125, %124 : vector<8x32xf32>
    %cst_45 = arith.constant 5.000000e-01 : f32
    %127 = vector.broadcast %cst_45 : f32 to vector<8x32xf32>
    %128 = arith.addf %126, %127 : vector<8x32xf32>
    %129 = vector.extract_strided_slice %118 {offsets = [0, 64], sizes = [8, 32], strides = [1, 1]} : vector<8x128xf32> to vector<8x32xf32>
    %130 = vector.extract_strided_slice %118 {offsets = [0, 96], sizes = [8, 32], strides = [1, 1]} : vector<8x128xf32> to vector<8x32xf32>
    %cst_46 = arith.constant 5.000000e-01 : f32
    %131 = vector.broadcast %cst_46 : f32 to vector<8x32xf32>
    %132 = arith.mulf %131, %130 : vector<8x32xf32>
    %cst_47 = arith.constant 5.000000e-01 : f32
    %133 = vector.broadcast %cst_47 : f32 to vector<8x32xf32>
    %134 = arith.addf %132, %133 : vector<8x32xf32>
    %135 = arith.mulf %128, %87 : vector<8x32xf32>
    %136 = arith.mulf %123, %129 : vector<8x32xf32>
    %137 = arith.addf %135, %136 : vector<8x32xf32>
    %138 = math.tanh %137 : vector<8x32xf32>
    %139 = arith.mulf %134, %138 : vector<8x32xf32>
    %140 = tpu.concatenate %139, %114 in 1 : vector<8x32xf32>, vector<8x32xf32> -> vector<8x64xf32>
    %cst_48 = arith.constant dense<0.000000e+00> : vector<8x128xf32>
    %141 = tpu.matmul %140, %3, %cst_48 {dimension_numbers = #tpu.dot_dimension_numbers<[1], [0], [0], [1], [0, 0, 1, 1], [], []>} : vector<8x64xf32>, vector<64x128xf32>, vector<8x128xf32> -> vector<8x128xf32>
    %142 = arith.addf %141, %4 : vector<8x128xf32>
    %143 = math.tanh %142 : vector<8x128xf32>
    %144 = vector.extract_strided_slice %143 {offsets = [0, 0], sizes = [8, 32], strides = [1, 1]} : vector<8x128xf32> to vector<8x32xf32>
    %cst_49 = arith.constant 5.000000e-01 : f32
    %145 = vector.broadcast %cst_49 : f32 to vector<8x32xf32>
    %146 = arith.mulf %145, %144 : vector<8x32xf32>
    %cst_50 = arith.constant 5.000000e-01 : f32
    %147 = vector.broadcast %cst_50 : f32 to vector<8x32xf32>
    %148 = arith.addf %146, %147 : vector<8x32xf32>
    %149 = vector.extract_strided_slice %143 {offsets = [0, 32], sizes = [8, 32], strides = [1, 1]} : vector<8x128xf32> to vector<8x32xf32>
    %cst_51 = arith.constant 5.000000e-01 : f32
    %150 = vector.broadcast %cst_51 : f32 to vector<8x32xf32>
    %151 = arith.mulf %150, %149 : vector<8x32xf32>
    %cst_52 = arith.constant 5.000000e-01 : f32
    %152 = vector.broadcast %cst_52 : f32 to vector<8x32xf32>
    %153 = arith.addf %151, %152 : vector<8x32xf32>
    %154 = vector.extract_strided_slice %143 {offsets = [0, 64], sizes = [8, 32], strides = [1, 1]} : vector<8x128xf32> to vector<8x32xf32>
    %155 = vector.extract_strided_slice %143 {offsets = [0, 96], sizes = [8, 32], strides = [1, 1]} : vector<8x128xf32> to vector<8x32xf32>
    %cst_53 = arith.constant 5.000000e-01 : f32
    %156 = vector.broadcast %cst_53 : f32 to vector<8x32xf32>
    %157 = arith.mulf %156, %155 : vector<8x32xf32>
    %cst_54 = arith.constant 5.000000e-01 : f32
    %158 = vector.broadcast %cst_54 : f32 to vector<8x32xf32>
    %159 = arith.addf %157, %158 : vector<8x32xf32>
    %160 = arith.mulf %153, %112 : vector<8x32xf32>
    %161 = arith.mulf %148, %154 : vector<8x32xf32>
    %162 = arith.addf %160, %161 : vector<8x32xf32>
    %163 = math.tanh %162 : vector<8x32xf32>
    %164 = arith.mulf %159, %163 : vector<8x32xf32>
    %165 = vector.extract_strided_slice %10 {offsets = [24, 0], sizes = [8, 128], strides = [1, 1]} : vector<64x128xf32> to vector<8x128xf32>
    %cst_55 = arith.constant dense<0.000000e+00> : vector<8x128xf32>
    %166 = tpu.matmul %139, %1, %cst_55 {dimension_numbers = #tpu.dot_dimension_numbers<[1], [0], [0], [1], [0, 0, 1, 1], [], []>} : vector<8x32xf32>, vector<32x128xf32>, vector<8x128xf32> -> vector<8x128xf32>
    %167 = arith.addf %165, %166 : vector<8x128xf32>
    %168 = math.tanh %167 : vector<8x128xf32>
    %169 = vector.extract_strided_slice %168 {offsets = [0, 0], sizes = [8, 32], strides = [1, 1]} : vector<8x128xf32> to vector<8x32xf32>
    %cst_56 = arith.constant 5.000000e-01 : f32
    %170 = vector.broadcast %cst_56 : f32 to vector<8x32xf32>
    %171 = arith.mulf %170, %169 : vector<8x32xf32>
    %cst_57 = arith.constant 5.000000e-01 : f32
    %172 = vector.broadcast %cst_57 : f32 to vector<8x32xf32>
    %173 = arith.addf %171, %172 : vector<8x32xf32>
    %174 = vector.extract_strided_slice %168 {offsets = [0, 32], sizes = [8, 32], strides = [1, 1]} : vector<8x128xf32> to vector<8x32xf32>
    %cst_58 = arith.constant 5.000000e-01 : f32
    %175 = vector.broadcast %cst_58 : f32 to vector<8x32xf32>
    %176 = arith.mulf %175, %174 : vector<8x32xf32>
    %cst_59 = arith.constant 5.000000e-01 : f32
    %177 = vector.broadcast %cst_59 : f32 to vector<8x32xf32>
    %178 = arith.addf %176, %177 : vector<8x32xf32>
    %179 = vector.extract_strided_slice %168 {offsets = [0, 64], sizes = [8, 32], strides = [1, 1]} : vector<8x128xf32> to vector<8x32xf32>
    %180 = vector.extract_strided_slice %168 {offsets = [0, 96], sizes = [8, 32], strides = [1, 1]} : vector<8x128xf32> to vector<8x32xf32>
    %cst_60 = arith.constant 5.000000e-01 : f32
    %181 = vector.broadcast %cst_60 : f32 to vector<8x32xf32>
    %182 = arith.mulf %181, %180 : vector<8x32xf32>
    %cst_61 = arith.constant 5.000000e-01 : f32
    %183 = vector.broadcast %cst_61 : f32 to vector<8x32xf32>
    %184 = arith.addf %182, %183 : vector<8x32xf32>
    %185 = arith.mulf %178, %137 : vector<8x32xf32>
    %186 = arith.mulf %173, %179 : vector<8x32xf32>
    %187 = arith.addf %185, %186 : vector<8x32xf32>
    %188 = math.tanh %187 : vector<8x32xf32>
    %189 = arith.mulf %184, %188 : vector<8x32xf32>
    %190 = tpu.concatenate %189, %164 in 1 : vector<8x32xf32>, vector<8x32xf32> -> vector<8x64xf32>
    %cst_62 = arith.constant dense<0.000000e+00> : vector<8x128xf32>
    %191 = tpu.matmul %190, %3, %cst_62 {dimension_numbers = #tpu.dot_dimension_numbers<[1], [0], [0], [1], [0, 0, 1, 1], [], []>} : vector<8x64xf32>, vector<64x128xf32>, vector<8x128xf32> -> vector<8x128xf32>
    %192 = arith.addf %191, %4 : vector<8x128xf32>
    %193 = math.tanh %192 : vector<8x128xf32>
    %194 = vector.extract_strided_slice %193 {offsets = [0, 0], sizes = [8, 32], strides = [1, 1]} : vector<8x128xf32> to vector<8x32xf32>
    %cst_63 = arith.constant 5.000000e-01 : f32
    %195 = vector.broadcast %cst_63 : f32 to vector<8x32xf32>
    %196 = arith.mulf %195, %194 : vector<8x32xf32>
    %cst_64 = arith.constant 5.000000e-01 : f32
    %197 = vector.broadcast %cst_64 : f32 to vector<8x32xf32>
    %198 = arith.addf %196, %197 : vector<8x32xf32>
    %199 = vector.extract_strided_slice %193 {offsets = [0, 32], sizes = [8, 32], strides = [1, 1]} : vector<8x128xf32> to vector<8x32xf32>
    %cst_65 = arith.constant 5.000000e-01 : f32
    %200 = vector.broadcast %cst_65 : f32 to vector<8x32xf32>
    %201 = arith.mulf %200, %199 : vector<8x32xf32>
    %cst_66 = arith.constant 5.000000e-01 : f32
    %202 = vector.broadcast %cst_66 : f32 to vector<8x32xf32>
    %203 = arith.addf %201, %202 : vector<8x32xf32>
    %204 = vector.extract_strided_slice %193 {offsets = [0, 64], sizes = [8, 32], strides = [1, 1]} : vector<8x128xf32> to vector<8x32xf32>
    %205 = vector.extract_strided_slice %193 {offsets = [0, 96], sizes = [8, 32], strides = [1, 1]} : vector<8x128xf32> to vector<8x32xf32>
    %cst_67 = arith.constant 5.000000e-01 : f32
    %206 = vector.broadcast %cst_67 : f32 to vector<8x32xf32>
    %207 = arith.mulf %206, %205 : vector<8x32xf32>
    %cst_68 = arith.constant 5.000000e-01 : f32
    %208 = vector.broadcast %cst_68 : f32 to vector<8x32xf32>
    %209 = arith.addf %207, %208 : vector<8x32xf32>
    %210 = arith.mulf %203, %162 : vector<8x32xf32>
    %211 = arith.mulf %198, %204 : vector<8x32xf32>
    %212 = arith.addf %210, %211 : vector<8x32xf32>
    %213 = math.tanh %212 : vector<8x32xf32>
    %214 = arith.mulf %209, %213 : vector<8x32xf32>
    %215 = vector.extract_strided_slice %10 {offsets = [32, 0], sizes = [8, 128], strides = [1, 1]} : vector<64x128xf32> to vector<8x128xf32>
    %cst_69 = arith.constant dense<0.000000e+00> : vector<8x128xf32>
    %216 = tpu.matmul %189, %1, %cst_69 {dimension_numbers = #tpu.dot_dimension_numbers<[1], [0], [0], [1], [0, 0, 1, 1], [], []>} : vector<8x32xf32>, vector<32x128xf32>, vector<8x128xf32> -> vector<8x128xf32>
    %217 = arith.addf %215, %216 : vector<8x128xf32>
    %218 = math.tanh %217 : vector<8x128xf32>
    %219 = vector.extract_strided_slice %218 {offsets = [0, 0], sizes = [8, 32], strides = [1, 1]} : vector<8x128xf32> to vector<8x32xf32>
    %cst_70 = arith.constant 5.000000e-01 : f32
    %220 = vector.broadcast %cst_70 : f32 to vector<8x32xf32>
    %221 = arith.mulf %220, %219 : vector<8x32xf32>
    %cst_71 = arith.constant 5.000000e-01 : f32
    %222 = vector.broadcast %cst_71 : f32 to vector<8x32xf32>
    %223 = arith.addf %221, %222 : vector<8x32xf32>
    %224 = vector.extract_strided_slice %218 {offsets = [0, 32], sizes = [8, 32], strides = [1, 1]} : vector<8x128xf32> to vector<8x32xf32>
    %cst_72 = arith.constant 5.000000e-01 : f32
    %225 = vector.broadcast %cst_72 : f32 to vector<8x32xf32>
    %226 = arith.mulf %225, %224 : vector<8x32xf32>
    %cst_73 = arith.constant 5.000000e-01 : f32
    %227 = vector.broadcast %cst_73 : f32 to vector<8x32xf32>
    %228 = arith.addf %226, %227 : vector<8x32xf32>
    %229 = vector.extract_strided_slice %218 {offsets = [0, 64], sizes = [8, 32], strides = [1, 1]} : vector<8x128xf32> to vector<8x32xf32>
    %230 = vector.extract_strided_slice %218 {offsets = [0, 96], sizes = [8, 32], strides = [1, 1]} : vector<8x128xf32> to vector<8x32xf32>
    %cst_74 = arith.constant 5.000000e-01 : f32
    %231 = vector.broadcast %cst_74 : f32 to vector<8x32xf32>
    %232 = arith.mulf %231, %230 : vector<8x32xf32>
    %cst_75 = arith.constant 5.000000e-01 : f32
    %233 = vector.broadcast %cst_75 : f32 to vector<8x32xf32>
    %234 = arith.addf %232, %233 : vector<8x32xf32>
    %235 = arith.mulf %228, %187 : vector<8x32xf32>
    %236 = arith.mulf %223, %229 : vector<8x32xf32>
    %237 = arith.addf %235, %236 : vector<8x32xf32>
    %238 = math.tanh %237 : vector<8x32xf32>
    %239 = arith.mulf %234, %238 : vector<8x32xf32>
    %240 = tpu.concatenate %239, %214 in 1 : vector<8x32xf32>, vector<8x32xf32> -> vector<8x64xf32>
    %cst_76 = arith.constant dense<0.000000e+00> : vector<8x128xf32>
    %241 = tpu.matmul %240, %3, %cst_76 {dimension_numbers = #tpu.dot_dimension_numbers<[1], [0], [0], [1], [0, 0, 1, 1], [], []>} : vector<8x64xf32>, vector<64x128xf32>, vector<8x128xf32> -> vector<8x128xf32>
    %242 = arith.addf %241, %4 : vector<8x128xf32>
    %243 = math.tanh %242 : vector<8x128xf32>
    %244 = vector.extract_strided_slice %243 {offsets = [0, 0], sizes = [8, 32], strides = [1, 1]} : vector<8x128xf32> to vector<8x32xf32>
    %cst_77 = arith.constant 5.000000e-01 : f32
    %245 = vector.broadcast %cst_77 : f32 to vector<8x32xf32>
    %246 = arith.mulf %245, %244 : vector<8x32xf32>
    %cst_78 = arith.constant 5.000000e-01 : f32
    %247 = vector.broadcast %cst_78 : f32 to vector<8x32xf32>
    %248 = arith.addf %246, %247 : vector<8x32xf32>
    %249 = vector.extract_strided_slice %243 {offsets = [0, 32], sizes = [8, 32], strides = [1, 1]} : vector<8x128xf32> to vector<8x32xf32>
    %cst_79 = arith.constant 5.000000e-01 : f32
    %250 = vector.broadcast %cst_79 : f32 to vector<8x32xf32>
    %251 = arith.mulf %250, %249 : vector<8x32xf32>
    %cst_80 = arith.constant 5.000000e-01 : f32
    %252 = vector.broadcast %cst_80 : f32 to vector<8x32xf32>
    %253 = arith.addf %251, %252 : vector<8x32xf32>
    %254 = vector.extract_strided_slice %243 {offsets = [0, 64], sizes = [8, 32], strides = [1, 1]} : vector<8x128xf32> to vector<8x32xf32>
    %255 = vector.extract_strided_slice %243 {offsets = [0, 96], sizes = [8, 32], strides = [1, 1]} : vector<8x128xf32> to vector<8x32xf32>
    %cst_81 = arith.constant 5.000000e-01 : f32
    %256 = vector.broadcast %cst_81 : f32 to vector<8x32xf32>
    %257 = arith.mulf %256, %255 : vector<8x32xf32>
    %cst_82 = arith.constant 5.000000e-01 : f32
    %258 = vector.broadcast %cst_82 : f32 to vector<8x32xf32>
    %259 = arith.addf %257, %258 : vector<8x32xf32>
    %260 = arith.mulf %253, %212 : vector<8x32xf32>
    %261 = arith.mulf %248, %254 : vector<8x32xf32>
    %262 = arith.addf %260, %261 : vector<8x32xf32>
    %263 = math.tanh %262 : vector<8x32xf32>
    %264 = arith.mulf %259, %263 : vector<8x32xf32>
    %265 = vector.extract_strided_slice %10 {offsets = [40, 0], sizes = [8, 128], strides = [1, 1]} : vector<64x128xf32> to vector<8x128xf32>
    %cst_83 = arith.constant dense<0.000000e+00> : vector<8x128xf32>
    %266 = tpu.matmul %239, %1, %cst_83 {dimension_numbers = #tpu.dot_dimension_numbers<[1], [0], [0], [1], [0, 0, 1, 1], [], []>} : vector<8x32xf32>, vector<32x128xf32>, vector<8x128xf32> -> vector<8x128xf32>
    %267 = arith.addf %265, %266 : vector<8x128xf32>
    %268 = math.tanh %267 : vector<8x128xf32>
    %269 = vector.extract_strided_slice %268 {offsets = [0, 0], sizes = [8, 32], strides = [1, 1]} : vector<8x128xf32> to vector<8x32xf32>
    %cst_84 = arith.constant 5.000000e-01 : f32
    %270 = vector.broadcast %cst_84 : f32 to vector<8x32xf32>
    %271 = arith.mulf %270, %269 : vector<8x32xf32>
    %cst_85 = arith.constant 5.000000e-01 : f32
    %272 = vector.broadcast %cst_85 : f32 to vector<8x32xf32>
    %273 = arith.addf %271, %272 : vector<8x32xf32>
    %274 = vector.extract_strided_slice %268 {offsets = [0, 32], sizes = [8, 32], strides = [1, 1]} : vector<8x128xf32> to vector<8x32xf32>
    %cst_86 = arith.constant 5.000000e-01 : f32
    %275 = vector.broadcast %cst_86 : f32 to vector<8x32xf32>
    %276 = arith.mulf %275, %274 : vector<8x32xf32>
    %cst_87 = arith.constant 5.000000e-01 : f32
    %277 = vector.broadcast %cst_87 : f32 to vector<8x32xf32>
    %278 = arith.addf %276, %277 : vector<8x32xf32>
    %279 = vector.extract_strided_slice %268 {offsets = [0, 64], sizes = [8, 32], strides = [1, 1]} : vector<8x128xf32> to vector<8x32xf32>
    %280 = vector.extract_strided_slice %268 {offsets = [0, 96], sizes = [8, 32], strides = [1, 1]} : vector<8x128xf32> to vector<8x32xf32>
    %cst_88 = arith.constant 5.000000e-01 : f32
    %281 = vector.broadcast %cst_88 : f32 to vector<8x32xf32>
    %282 = arith.mulf %281, %280 : vector<8x32xf32>
    %cst_89 = arith.constant 5.000000e-01 : f32
    %283 = vector.broadcast %cst_89 : f32 to vector<8x32xf32>
    %284 = arith.addf %282, %283 : vector<8x32xf32>
    %285 = arith.mulf %278, %237 : vector<8x32xf32>
    %286 = arith.mulf %273, %279 : vector<8x32xf32>
    %287 = arith.addf %285, %286 : vector<8x32xf32>
    %288 = math.tanh %287 : vector<8x32xf32>
    %289 = arith.mulf %284, %288 : vector<8x32xf32>
    %290 = tpu.concatenate %289, %264 in 1 : vector<8x32xf32>, vector<8x32xf32> -> vector<8x64xf32>
    %cst_90 = arith.constant dense<0.000000e+00> : vector<8x128xf32>
    %291 = tpu.matmul %290, %3, %cst_90 {dimension_numbers = #tpu.dot_dimension_numbers<[1], [0], [0], [1], [0, 0, 1, 1], [], []>} : vector<8x64xf32>, vector<64x128xf32>, vector<8x128xf32> -> vector<8x128xf32>
    %292 = arith.addf %291, %4 : vector<8x128xf32>
    %293 = math.tanh %292 : vector<8x128xf32>
    %294 = vector.extract_strided_slice %293 {offsets = [0, 0], sizes = [8, 32], strides = [1, 1]} : vector<8x128xf32> to vector<8x32xf32>
    %cst_91 = arith.constant 5.000000e-01 : f32
    %295 = vector.broadcast %cst_91 : f32 to vector<8x32xf32>
    %296 = arith.mulf %295, %294 : vector<8x32xf32>
    %cst_92 = arith.constant 5.000000e-01 : f32
    %297 = vector.broadcast %cst_92 : f32 to vector<8x32xf32>
    %298 = arith.addf %296, %297 : vector<8x32xf32>
    %299 = vector.extract_strided_slice %293 {offsets = [0, 32], sizes = [8, 32], strides = [1, 1]} : vector<8x128xf32> to vector<8x32xf32>
    %cst_93 = arith.constant 5.000000e-01 : f32
    %300 = vector.broadcast %cst_93 : f32 to vector<8x32xf32>
    %301 = arith.mulf %300, %299 : vector<8x32xf32>
    %cst_94 = arith.constant 5.000000e-01 : f32
    %302 = vector.broadcast %cst_94 : f32 to vector<8x32xf32>
    %303 = arith.addf %301, %302 : vector<8x32xf32>
    %304 = vector.extract_strided_slice %293 {offsets = [0, 64], sizes = [8, 32], strides = [1, 1]} : vector<8x128xf32> to vector<8x32xf32>
    %305 = vector.extract_strided_slice %293 {offsets = [0, 96], sizes = [8, 32], strides = [1, 1]} : vector<8x128xf32> to vector<8x32xf32>
    %cst_95 = arith.constant 5.000000e-01 : f32
    %306 = vector.broadcast %cst_95 : f32 to vector<8x32xf32>
    %307 = arith.mulf %306, %305 : vector<8x32xf32>
    %cst_96 = arith.constant 5.000000e-01 : f32
    %308 = vector.broadcast %cst_96 : f32 to vector<8x32xf32>
    %309 = arith.addf %307, %308 : vector<8x32xf32>
    %310 = arith.mulf %303, %262 : vector<8x32xf32>
    %311 = arith.mulf %298, %304 : vector<8x32xf32>
    %312 = arith.addf %310, %311 : vector<8x32xf32>
    %313 = math.tanh %312 : vector<8x32xf32>
    %314 = arith.mulf %309, %313 : vector<8x32xf32>
    %315 = vector.extract_strided_slice %10 {offsets = [48, 0], sizes = [8, 128], strides = [1, 1]} : vector<64x128xf32> to vector<8x128xf32>
    %cst_97 = arith.constant dense<0.000000e+00> : vector<8x128xf32>
    %316 = tpu.matmul %289, %1, %cst_97 {dimension_numbers = #tpu.dot_dimension_numbers<[1], [0], [0], [1], [0, 0, 1, 1], [], []>} : vector<8x32xf32>, vector<32x128xf32>, vector<8x128xf32> -> vector<8x128xf32>
    %317 = arith.addf %315, %316 : vector<8x128xf32>
    %318 = math.tanh %317 : vector<8x128xf32>
    %319 = vector.extract_strided_slice %318 {offsets = [0, 0], sizes = [8, 32], strides = [1, 1]} : vector<8x128xf32> to vector<8x32xf32>
    %cst_98 = arith.constant 5.000000e-01 : f32
    %320 = vector.broadcast %cst_98 : f32 to vector<8x32xf32>
    %321 = arith.mulf %320, %319 : vector<8x32xf32>
    %cst_99 = arith.constant 5.000000e-01 : f32
    %322 = vector.broadcast %cst_99 : f32 to vector<8x32xf32>
    %323 = arith.addf %321, %322 : vector<8x32xf32>
    %324 = vector.extract_strided_slice %318 {offsets = [0, 32], sizes = [8, 32], strides = [1, 1]} : vector<8x128xf32> to vector<8x32xf32>
    %cst_100 = arith.constant 5.000000e-01 : f32
    %325 = vector.broadcast %cst_100 : f32 to vector<8x32xf32>
    %326 = arith.mulf %325, %324 : vector<8x32xf32>
    %cst_101 = arith.constant 5.000000e-01 : f32
    %327 = vector.broadcast %cst_101 : f32 to vector<8x32xf32>
    %328 = arith.addf %326, %327 : vector<8x32xf32>
    %329 = vector.extract_strided_slice %318 {offsets = [0, 64], sizes = [8, 32], strides = [1, 1]} : vector<8x128xf32> to vector<8x32xf32>
    %330 = vector.extract_strided_slice %318 {offsets = [0, 96], sizes = [8, 32], strides = [1, 1]} : vector<8x128xf32> to vector<8x32xf32>
    %cst_102 = arith.constant 5.000000e-01 : f32
    %331 = vector.broadcast %cst_102 : f32 to vector<8x32xf32>
    %332 = arith.mulf %331, %330 : vector<8x32xf32>
    %cst_103 = arith.constant 5.000000e-01 : f32
    %333 = vector.broadcast %cst_103 : f32 to vector<8x32xf32>
    %334 = arith.addf %332, %333 : vector<8x32xf32>
    %335 = arith.mulf %328, %287 : vector<8x32xf32>
    %336 = arith.mulf %323, %329 : vector<8x32xf32>
    %337 = arith.addf %335, %336 : vector<8x32xf32>
    %338 = math.tanh %337 : vector<8x32xf32>
    %339 = arith.mulf %334, %338 : vector<8x32xf32>
    %340 = tpu.concatenate %339, %314 in 1 : vector<8x32xf32>, vector<8x32xf32> -> vector<8x64xf32>
    %cst_104 = arith.constant dense<0.000000e+00> : vector<8x128xf32>
    %341 = tpu.matmul %340, %3, %cst_104 {dimension_numbers = #tpu.dot_dimension_numbers<[1], [0], [0], [1], [0, 0, 1, 1], [], []>} : vector<8x64xf32>, vector<64x128xf32>, vector<8x128xf32> -> vector<8x128xf32>
    %342 = arith.addf %341, %4 : vector<8x128xf32>
    %343 = math.tanh %342 : vector<8x128xf32>
    %344 = vector.extract_strided_slice %343 {offsets = [0, 0], sizes = [8, 32], strides = [1, 1]} : vector<8x128xf32> to vector<8x32xf32>
    %cst_105 = arith.constant 5.000000e-01 : f32
    %345 = vector.broadcast %cst_105 : f32 to vector<8x32xf32>
    %346 = arith.mulf %345, %344 : vector<8x32xf32>
    %cst_106 = arith.constant 5.000000e-01 : f32
    %347 = vector.broadcast %cst_106 : f32 to vector<8x32xf32>
    %348 = arith.addf %346, %347 : vector<8x32xf32>
    %349 = vector.extract_strided_slice %343 {offsets = [0, 32], sizes = [8, 32], strides = [1, 1]} : vector<8x128xf32> to vector<8x32xf32>
    %cst_107 = arith.constant 5.000000e-01 : f32
    %350 = vector.broadcast %cst_107 : f32 to vector<8x32xf32>
    %351 = arith.mulf %350, %349 : vector<8x32xf32>
    %cst_108 = arith.constant 5.000000e-01 : f32
    %352 = vector.broadcast %cst_108 : f32 to vector<8x32xf32>
    %353 = arith.addf %351, %352 : vector<8x32xf32>
    %354 = vector.extract_strided_slice %343 {offsets = [0, 64], sizes = [8, 32], strides = [1, 1]} : vector<8x128xf32> to vector<8x32xf32>
    %355 = vector.extract_strided_slice %343 {offsets = [0, 96], sizes = [8, 32], strides = [1, 1]} : vector<8x128xf32> to vector<8x32xf32>
    %cst_109 = arith.constant 5.000000e-01 : f32
    %356 = vector.broadcast %cst_109 : f32 to vector<8x32xf32>
    %357 = arith.mulf %356, %355 : vector<8x32xf32>
    %cst_110 = arith.constant 5.000000e-01 : f32
    %358 = vector.broadcast %cst_110 : f32 to vector<8x32xf32>
    %359 = arith.addf %357, %358 : vector<8x32xf32>
    %360 = arith.mulf %353, %312 : vector<8x32xf32>
    %361 = arith.mulf %348, %354 : vector<8x32xf32>
    %362 = arith.addf %360, %361 : vector<8x32xf32>
    %363 = math.tanh %362 : vector<8x32xf32>
    %364 = arith.mulf %359, %363 : vector<8x32xf32>
    %365 = vector.extract_strided_slice %10 {offsets = [56, 0], sizes = [8, 128], strides = [1, 1]} : vector<64x128xf32> to vector<8x128xf32>
    %cst_111 = arith.constant dense<0.000000e+00> : vector<8x128xf32>
    %366 = tpu.matmul %339, %1, %cst_111 {dimension_numbers = #tpu.dot_dimension_numbers<[1], [0], [0], [1], [0, 0, 1, 1], [], []>} : vector<8x32xf32>, vector<32x128xf32>, vector<8x128xf32> -> vector<8x128xf32>
    %367 = arith.addf %365, %366 : vector<8x128xf32>
    %368 = math.tanh %367 : vector<8x128xf32>
    %369 = vector.extract_strided_slice %368 {offsets = [0, 0], sizes = [8, 32], strides = [1, 1]} : vector<8x128xf32> to vector<8x32xf32>
    %cst_112 = arith.constant 5.000000e-01 : f32
    %370 = vector.broadcast %cst_112 : f32 to vector<8x32xf32>
    %371 = arith.mulf %370, %369 : vector<8x32xf32>
    %cst_113 = arith.constant 5.000000e-01 : f32
    %372 = vector.broadcast %cst_113 : f32 to vector<8x32xf32>
    %373 = arith.addf %371, %372 : vector<8x32xf32>
    %374 = vector.extract_strided_slice %368 {offsets = [0, 32], sizes = [8, 32], strides = [1, 1]} : vector<8x128xf32> to vector<8x32xf32>
    %cst_114 = arith.constant 5.000000e-01 : f32
    %375 = vector.broadcast %cst_114 : f32 to vector<8x32xf32>
    %376 = arith.mulf %375, %374 : vector<8x32xf32>
    %cst_115 = arith.constant 5.000000e-01 : f32
    %377 = vector.broadcast %cst_115 : f32 to vector<8x32xf32>
    %378 = arith.addf %376, %377 : vector<8x32xf32>
    %379 = vector.extract_strided_slice %368 {offsets = [0, 64], sizes = [8, 32], strides = [1, 1]} : vector<8x128xf32> to vector<8x32xf32>
    %380 = vector.extract_strided_slice %368 {offsets = [0, 96], sizes = [8, 32], strides = [1, 1]} : vector<8x128xf32> to vector<8x32xf32>
    %cst_116 = arith.constant 5.000000e-01 : f32
    %381 = vector.broadcast %cst_116 : f32 to vector<8x32xf32>
    %382 = arith.mulf %381, %380 : vector<8x32xf32>
    %cst_117 = arith.constant 5.000000e-01 : f32
    %383 = vector.broadcast %cst_117 : f32 to vector<8x32xf32>
    %384 = arith.addf %382, %383 : vector<8x32xf32>
    %385 = arith.mulf %378, %337 : vector<8x32xf32>
    %386 = arith.mulf %373, %379 : vector<8x32xf32>
    %387 = arith.addf %385, %386 : vector<8x32xf32>
    %388 = math.tanh %387 : vector<8x32xf32>
    %389 = arith.mulf %384, %388 : vector<8x32xf32>
    %390 = tpu.concatenate %389, %364 in 1 : vector<8x32xf32>, vector<8x32xf32> -> vector<8x64xf32>
    %cst_118 = arith.constant dense<0.000000e+00> : vector<8x128xf32>
    %391 = tpu.matmul %390, %3, %cst_118 {dimension_numbers = #tpu.dot_dimension_numbers<[1], [0], [0], [1], [0, 0, 1, 1], [], []>} : vector<8x64xf32>, vector<64x128xf32>, vector<8x128xf32> -> vector<8x128xf32>
    %392 = arith.addf %391, %4 : vector<8x128xf32>
    %393 = math.tanh %392 : vector<8x128xf32>
    %394 = vector.extract_strided_slice %393 {offsets = [0, 0], sizes = [8, 32], strides = [1, 1]} : vector<8x128xf32> to vector<8x32xf32>
    %cst_119 = arith.constant 5.000000e-01 : f32
    %395 = vector.broadcast %cst_119 : f32 to vector<8x32xf32>
    %396 = arith.mulf %395, %394 : vector<8x32xf32>
    %cst_120 = arith.constant 5.000000e-01 : f32
    %397 = vector.broadcast %cst_120 : f32 to vector<8x32xf32>
    %398 = arith.addf %396, %397 : vector<8x32xf32>
    %399 = vector.extract_strided_slice %393 {offsets = [0, 32], sizes = [8, 32], strides = [1, 1]} : vector<8x128xf32> to vector<8x32xf32>
    %cst_121 = arith.constant 5.000000e-01 : f32
    %400 = vector.broadcast %cst_121 : f32 to vector<8x32xf32>
    %401 = arith.mulf %400, %399 : vector<8x32xf32>
    %cst_122 = arith.constant 5.000000e-01 : f32
    %402 = vector.broadcast %cst_122 : f32 to vector<8x32xf32>
    %403 = arith.addf %401, %402 : vector<8x32xf32>
    %404 = vector.extract_strided_slice %393 {offsets = [0, 64], sizes = [8, 32], strides = [1, 1]} : vector<8x128xf32> to vector<8x32xf32>
    %405 = vector.extract_strided_slice %393 {offsets = [0, 96], sizes = [8, 32], strides = [1, 1]} : vector<8x128xf32> to vector<8x32xf32>
    %cst_123 = arith.constant 5.000000e-01 : f32
    %406 = vector.broadcast %cst_123 : f32 to vector<8x32xf32>
    %407 = arith.mulf %406, %405 : vector<8x32xf32>
    %cst_124 = arith.constant 5.000000e-01 : f32
    %408 = vector.broadcast %cst_124 : f32 to vector<8x32xf32>
    %409 = arith.addf %407, %408 : vector<8x32xf32>
    %410 = arith.mulf %403, %362 : vector<8x32xf32>
    %411 = arith.mulf %398, %404 : vector<8x32xf32>
    %412 = arith.addf %410, %411 : vector<8x32xf32>
    %413 = math.tanh %412 : vector<8x32xf32>
    %414 = arith.mulf %409, %413 : vector<8x32xf32>
    %415 = tpu.concatenate %64, %114, %164, %214, %264, %314, %364, %414 in 0 : vector<8x32xf32>, vector<8x32xf32>, vector<8x32xf32>, vector<8x32xf32>, vector<8x32xf32>, vector<8x32xf32>, vector<8x32xf32>, vector<8x32xf32> -> vector<64x32xf32>
    %cst_125 = arith.constant dense<0.000000e+00> : vector<64x128xf32>
    %416 = tpu.matmul %415, %5, %cst_125 {dimension_numbers = #tpu.dot_dimension_numbers<[1], [0], [0], [1], [0, 0, 1, 1], [], []>} : vector<64x32xf32>, vector<32x128xf32>, vector<64x128xf32> -> vector<64x128xf32>
    %417 = vector.broadcast %6 : vector<1x128xf32> to vector<64x128xf32>
    %418 = arith.addf %416, %417 : vector<64x128xf32>
    %c0_126 = arith.constant 0 : index
    %c0_127 = arith.constant 0 : index
    %419 = vector.load %arg2[%c0_126, %c0_127] : memref<64x128xf32, #tpu.memory_space<vmem>>, vector<64x128xf32>
    tpu.vector_store %arg2[%c0_126, %c0_127], %418 {strides = array<i32>} : memref<64x128xf32, #tpu.memory_space<vmem>>, vector<64x128xf32>,
    return
  }
}

</mosaic_0001>

<llo_original>
// kernel: lstm_reg_forward.1
$region0: #{lstm_reg_forward.1}
  #allocation0 [shape = 'u32[]', space=smem, size = 0x4, offset = 0x4, fixed_abs, tag = 'smem constant byte address 0x4 - core index']
  #allocation1 [shape = 'u32[72,128]{1,0:T(1,128)}', space=vmem, size = 0x9000, scoped, tag = 'internal scratch']
  %s0 = inlined_call_operand.vmem [shape: f32[64,16], index: 0, kind: input, shape index: {}]
  %s1 = inlined_call_operand.vmem [shape: f32[168,128], index: 1, kind: input, shape index: {}]
  %s2 = inlined_call_operand.vmem [shape: f32[64,128], index: 2, kind: output, shape index: {}]
  %s3 = sld [smem:[#allocation0]]
  $region18: #{lstm_reg_forward.1} parent=0
    _
  %s5 = ssub.s32 1, %s3
  %s6 = scalar_select 0, %s5, %s3
  // Predicated region
  $region2: #{lstm_reg_forward.1} parent=0 // pred_check
    _
  $region3: #{lstm_reg_forward.1} parent=0 // pred_check_branch
    %8 = sbr.rel (0) target = $region5
  $region4: #{lstm_reg_forward.1} parent=0 // pred_region
    _
  $region5: #{lstm_reg_forward.1} parent=0 // pred_fallthru
    _
  // Predicated region
  $region6: #{lstm_reg_forward.1} parent=0 // pred_check
    _
  $region7: #{lstm_reg_forward.1} parent=0 // pred_check_branch
    %10 = sbr.rel (0) target = $region9
  $region8: #{lstm_reg_forward.1} parent=0 // pred_region
    _
  $region9: #{lstm_reg_forward.1} parent=0 // pred_fallthru
    _
  %v11 = vld [vmem:[%s1] sm:$0xff]
  %v12 = vld [vmem:[%s1 + $0x8] sm:$0xff]
  %v13 = vld [vmem:[%s1 + $0x10] sm:$0xff]
  %v14 = vld [vmem:[%s1 + $0x18] sm:$0xff]
  %v15 = vld [vmem:[%s1 + $0x20] sm:$0xff]
  %v16 = vld [vmem:[%s1 + $0x28] sm:$0xff]
  %v17 = vld [vmem:[%s1 + $0x30] sm:$0x1]
  %v18 = vld [vmem:[%s1 + $0x38] sm:$0xff]
  %v19 = vld [vmem:[%s1 + $0x40] sm:$0xff]
  %v20 = vld [vmem:[%s1 + $0x48] sm:$0xff]
  %v21 = vld [vmem:[%s1 + $0x50] sm:$0xff]
  %v22 = vld [vmem:[%s1 + $0x58] sm:$0xff]
  %v23 = vld [vmem:[%s1 + $0x60] sm:$0xff]
  %v24 = vld [vmem:[%s1 + $0x68] sm:$0xff]
  %v25 = vld [vmem:[%s1 + $0x70] sm:$0xff]
  %v26 = vld [vmem:[%s1 + $0x78] sm:$0xff]
  %v27 = vld [vmem:[%s1 + $0x80] sm:$0xff]
  %v28 = vld [vmem:[%s1 + $0x88] sm:$0xff]
  %v29 = vld [vmem:[%s1 + $0x90] sm:$0xff]
  %v30 = vld [vmem:[%s1 + $0x98] sm:$0xff]
  %v31 = vld [vmem:[%s1 + $0xa0] sm:$0x1]
  %v32 = vld [vmem:[%s0] sm:$0xff]
  %v33 = vld [vmem:[%s0 + $0x8] sm:$0xff]
  %v34 = vld [vmem:[%s0 + $0x10] sm:$0xff]
  %v35 = vld [vmem:[%s0 + $0x18] sm:$0xff]
  %v36 = vld [vmem:[%s0 + $0x20] sm:$0xff]
  %v37 = vld [vmem:[%s0 + $0x28] sm:$0xff]
  %v38 = vld [vmem:[%s0 + $0x30] sm:$0xff]
  %v39 = vld [vmem:[%s0 + $0x38] sm:$0xff]
  %v40 = vperm.slane %v17, 0
  %vm41 = vcmask 130048
  %v43 = vsel %vm41, %v32, 0
  %v46 = vsel %vm41, %v33, 0
  %v49 = vsel %vm41, %v34, 0
  %v52 = vsel %vm41, %v35, 0
  %v55 = vsel %vm41, %v36, 0
  %v58 = vsel %vm41, %v37, 0
  %v61 = vsel %vm41, %v38, 0
  %v64 = vsel %vm41, %v39, 0
  %66 = vmatpush.msra.mxu0 0.0
  %67 = vmatpush.msra.mxu0 0.0
  %68 = vmatpush.msra.mxu0 0.0
  %69 = vmatpush.msra.mxu0 0.0
  %70 = vmatpush.msra.mxu0 0.0
  %71 = vmatpush.msra.mxu0 0.0
  %72 = vmatpush.msra.mxu0 0.0
  %73 = vmatpush.msra.mxu0 0.0
  %74 = vmatpush.msra.mxu0 0.0
  %75 = vmatpush.msra.mxu0 0.0
  %76 = vmatpush.msra.mxu0 0.0
  %77 = vmatpush.msra.mxu0 0.0
  %78 = vmatpush.msra.mxu0 0.0
  %79 = vmatpush.msra.mxu0 0.0
  %80 = vmatpush.msra.mxu0 %v12
  %81 = vmatpush.msra.mxu0 %v11
  %82 = vmatmul.f32.gmra.mxu0 %v43
  %v83 = vpop.f32.mrf.mxu0
  %v84 = vadd.f32 %v40, %v83
  %85 = vmatmul.f32.gmra.mxu0 %v46
  %v86 = vpop.f32.mrf.mxu0
  %v87 = vadd.f32 %v40, %v86
  %88 = vmatmul.f32.gmra.mxu0 %v49
  %v89 = vpop.f32.mrf.mxu0
  %v90 = vadd.f32 %v40, %v89
  %91 = vmatmul.f32.gmra.mxu0 %v52
  %v92 = vpop.f32.mrf.mxu0
  %v93 = vadd.f32 %v40, %v92
  %94 = vmatmul.f32.gmra.mxu0 %v55
  %v95 = vpop.f32.mrf.mxu0
  %v96 = vadd.f32 %v40, %v95
  %97 = vmatmul.f32.gmra.mxu0 %v58
  %v98 = vpop.f32.mrf.mxu0
  %v99 = vadd.f32 %v40, %v98
  %100 = vmatmul.f32.gmra.mxu0 %v61
  %v101 = vpop.f32.mrf.mxu0
  %v102 = vadd.f32 %v40, %v101
  %103 = vmatmul.f32.gmra.mxu0 %v64
  %v104 = vpop.f32.mrf.mxu0
  %v105 = vadd.f32 %v40, %v104
  %106 = vdwg.mxu0
  %vm107 = vcmask 261120
  %v109 = vsel %vm107, 0.0, 0
  %111 = vmatpush.msra.mxu0 0.0
  %112 = vmatpush.msra.mxu0 0.0
  %113 = vmatpush.msra.mxu0 0.0
  %114 = vmatpush.msra.mxu0 0.0
  %115 = vmatpush.msra.mxu0 0.0
  %116 = vmatpush.msra.mxu0 0.0
  %117 = vmatpush.msra.mxu0 0.0
  %118 = vmatpush.msra.mxu0 0.0
  %119 = vmatpush.msra.mxu0 0.0
  %120 = vmatpush.msra.mxu0 0.0
  %121 = vmatpush.msra.mxu0 0.0
  %122 = vmatpush.msra.mxu0 0.0
  %123 = vmatpush.msra.mxu0 %v16
  %124 = vmatpush.msra.mxu0 %v15
  %125 = vmatpush.msra.mxu0 %v14
  %126 = vmatpush.msra.mxu0 %v13
  %127 = vmatmul.f32.gmra.mxu0 %v109
  %v128 = vpop.f32.mrf.mxu0
  %v129 = vadd.f32 0.0, %v128
  %130 = vdwg.mxu0
  %v131 = vadd.f32 %v84, %v129
  %v132 = vtanh.pop %v131
  %v133 = vmul.f32 %v132, 0.5
  %v134 = vadd.f32 %v133, 0.5
  %v135 = vmul.f32 %v134, 0.0
  %137 = vrot.lane.b32.xlu0 %v132, 64
  %v138 = vpop.permute.xlu0 %137
  %v140 = vmul.f32 %v134, %v138
  %142 = vrot.lane.b32.xlu0 %v140, 32
  %v143 = vpop.permute.xlu0 %142
  %v145 = vadd.f32 %v135, %v143
  %v146 = vtanh.pop %v145
  %148 = vrot.lane.b32.xlu0 %v146, 64
  %v149 = vpop.permute.xlu0 %148
  %v151 = vmul.f32 %v134, %v149
  %153 = vrot.lane.b32.xlu0 %v151, 32
  %v154 = vpop.permute.xlu0 %153
  %v156 = vsel %vm107, %v154, 0.0
  %vm157 = vcmask 523264
  %v159 = vsel %vm157, %v156, 0
  %161 = vmatpush.msra.mxu0 0.0
  %162 = vmatpush.msra.mxu0 0.0
  %163 = vmatpush.msra.mxu0 0.0
  %164 = vmatpush.msra.mxu0 0.0
  %165 = vmatpush.msra.mxu0 0.0
  %166 = vmatpush.msra.mxu0 0.0
  %167 = vmatpush.msra.mxu0 0.0
  %168 = vmatpush.msra.mxu0 0.0
  %169 = vmatpush.msra.mxu0 %v25
  %170 = vmatpush.msra.mxu0 %v24
  %171 = vmatpush.msra.mxu0 %v23
  %172 = vmatpush.msra.mxu0 %v22
  %173 = vmatpush.msra.mxu0 %v21
  %174 = vmatpush.msra.mxu0 %v20
  %175 = vmatpush.msra.mxu0 %v19
  %176 = vmatpush.msra.mxu0 %v18
  %177 = vmatmul.f32.gmra.mxu0 %v159
  %v178 = vpop.f32.mrf.mxu0
  %v179 = vadd.f32 %v26, %v178
  %180 = vdwg.mxu0
  %v181 = vtanh.pop %v179
  %v182 = vmul.f32 %v181, 0.5
  %v183 = vadd.f32 %v182, 0.5
  %v184 = vmul.f32 %v183, 0.0
  %186 = vrot.lane.b32.xlu0 %v181, 64
  %v187 = vpop.permute.xlu0 %186
  %v189 = vmul.f32 %v183, %v187
  %191 = vrot.lane.b32.xlu0 %v189, 32
  %v192 = vpop.permute.xlu0 %191
  %v194 = vadd.f32 %v184, %v192
  %v195 = vtanh.pop %v194
  %197 = vrot.lane.b32.xlu0 %v195, 64
  %v198 = vpop.permute.xlu0 %197
  %v200 = vmul.f32 %v183, %v198
  %v201 = vsel %vm107, %v154, 0
  %203 = vmatpush.msra.mxu0 0.0
  %204 = vmatpush.msra.mxu0 0.0
  %205 = vmatpush.msra.mxu0 0.0
  %206 = vmatpush.msra.mxu0 0.0
  %207 = vmatpush.msra.mxu0 0.0
  %208 = vmatpush.msra.mxu0 0.0
  %209 = vmatpush.msra.mxu0 0.0
  %210 = vmatpush.msra.mxu0 0.0
  %211 = vmatpush.msra.mxu0 0.0
  %212 = vmatpush.msra.mxu0 0.0
  %213 = vmatpush.msra.mxu0 0.0
  %214 = vmatpush.msra.mxu0 0.0
  %215 = vmatpush.msra.mxu0 %v16
  %216 = vmatpush.msra.mxu0 %v15
  %217 = vmatpush.msra.mxu0 %v14
  %218 = vmatpush.msra.mxu0 %v13
  %219 = vmatmul.f32.gmra.mxu0 %v201
  %v220 = vpop.f32.mrf.mxu0
  %v221 = vadd.f32 0.0, %v220
  %222 = vdwg.mxu0
  %v223 = vadd.f32 %v87, %v221
  %v224 = vtanh.pop %v223
  %v225 = vmul.f32 %v224, 0.5
  %v226 = vadd.f32 %v225, 0.5
  %v227 = vmul.f32 %v226, %v145
  %229 = vrot.lane.b32.xlu0 %v224, 64
  %v230 = vpop.permute.xlu0 %229
  %v232 = vmul.f32 %v226, %v230
  %234 = vrot.lane.b32.xlu0 %v232, 32
  %v235 = vpop.permute.xlu0 %234
  %v237 = vadd.f32 %v227, %v235
  %v238 = vtanh.pop %v237
  %240 = vrot.lane.b32.xlu0 %v238, 64
  %v241 = vpop.permute.xlu0 %240
  %v243 = vmul.f32 %v226, %v241
  %245 = vrot.lane.b32.xlu0 %v243, 32
  %v246 = vpop.permute.xlu0 %245
  %249 = vrot.lane.b32.xlu0 %v200, 64
  %v250 = vpop.permute.xlu0 %249
  %v252 = vsel %vm107, %v246, %v250
  %v254 = vsel %vm157, %v252, 0
  %256 = vmatpush.msra.mxu0 0.0
  %257 = vmatpush.msra.mxu0 0.0
  %258 = vmatpush.msra.mxu0 0.0
  %259 = vmatpush.msra.mxu0 0.0
  %260 = vmatpush.msra.mxu0 0.0
  %261 = vmatpush.msra.mxu0 0.0
  %262 = vmatpush.msra.mxu0 0.0
  %263 = vmatpush.msra.mxu0 0.0
  %264 = vmatpush.msra.mxu0 %v25
  %265 = vmatpush.msra.mxu0 %v24
  %266 = vmatpush.msra.mxu0 %v23
  %267 = vmatpush.msra.mxu0 %v22
  %268 = vmatpush.msra.mxu0 %v21
  %269 = vmatpush.msra.mxu0 %v20
  %270 = vmatpush.msra.mxu0 %v19
  %271 = vmatpush.msra.mxu0 %v18
  %272 = vmatmul.f32.gmra.mxu0 %v254
  %v273 = vpop.f32.mrf.mxu0
  %v274 = vadd.f32 %v26, %v273
  %275 = vdwg.mxu0
  %v276 = vtanh.pop %v274
  %v277 = vmul.f32 %v276, 0.5
  %v278 = vadd.f32 %v277, 0.5
  %v279 = vmul.f32 %v278, %v194
  %281 = vrot.lane.b32.xlu0 %v276, 64
  %v282 = vpop.permute.xlu0 %281
  %v284 = vmul.f32 %v278, %v282
  %286 = vrot.lane.b32.xlu0 %v284, 32
  %v287 = vpop.permute.xlu0 %286
  %v289 = vadd.f32 %v279, %v287
  %v290 = vtanh.pop %v289
  %292 = vrot.lane.b32.xlu0 %v290, 64
  %v293 = vpop.permute.xlu0 %292
  %v295 = vmul.f32 %v278, %v293
  %v296 = vsel %vm107, %v246, 0
  %298 = vmatpush.msra.mxu0 0.0
  %299 = vmatpush.msra.mxu0 0.0
  %300 = vmatpush.msra.mxu0 0.0
  %301 = vmatpush.msra.mxu0 0.0
  %302 = vmatpush.msra.mxu0 0.0
  %303 = vmatpush.msra.mxu0 0.0
  %304 = vmatpush.msra.mxu0 0.0
  %305 = vmatpush.msra.mxu0 0.0
  %306 = vmatpush.msra.mxu0 0.0
  %307 = vmatpush.msra.mxu0 0.0
  %308 = vmatpush.msra.mxu0 0.0
  %309 = vmatpush.msra.mxu0 0.0
  %310 = vmatpush.msra.mxu0 %v16
  %311 = vmatpush.msra.mxu0 %v15
  %312 = vmatpush.msra.mxu0 %v14
  %313 = vmatpush.msra.mxu0 %v13
  %314 = vmatmul.f32.gmra.mxu0 %v296
  %v315 = vpop.f32.mrf.mxu0
  %v316 = vadd.f32 0.0, %v315
  %317 = vdwg.mxu0
  %v318 = vadd.f32 %v90, %v316
  %v319 = vtanh.pop %v318
  %v320 = vmul.f32 %v319, 0.5
  %v321 = vadd.f32 %v320, 0.5
  %v322 = vmul.f32 %v321, %v237
  %324 = vrot.lane.b32.xlu0 %v319, 64
  %v325 = vpop.permute.xlu0 %324
  %v327 = vmul.f32 %v321, %v325
  %329 = vrot.lane.b32.xlu0 %v327, 32
  %v330 = vpop.permute.xlu0 %329
  %v332 = vadd.f32 %v322, %v330
  %v333 = vtanh.pop %v332
  %335 = vrot.lane.b32.xlu0 %v333, 64
  %v336 = vpop.permute.xlu0 %335
  %v338 = vmul.f32 %v321, %v336
  %340 = vrot.lane.b32.xlu0 %v338, 32
  %v341 = vpop.permute.xlu0 %340
  %344 = vrot.lane.b32.xlu0 %v295, 64
  %v345 = vpop.permute.xlu0 %344
  %v347 = vsel %vm107, %v341, %v345
  %v349 = vsel %vm157, %v347, 0
  %351 = vmatpush.msra.mxu0 0.0
  %352 = vmatpush.msra.mxu0 0.0
  %353 = vmatpush.msra.mxu0 0.0
  %354 = vmatpush.msra.mxu0 0.0
  %355 = vmatpush.msra.mxu0 0.0
  %356 = vmatpush.msra.mxu0 0.0
  %357 = vmatpush.msra.mxu0 0.0
  %358 = vmatpush.msra.mxu0 0.0
  %359 = vmatpush.msra.mxu0 %v25
  %360 = vmatpush.msra.mxu0 %v24
  %361 = vmatpush.msra.mxu0 %v23
  %362 = vmatpush.msra.mxu0 %v22
  %363 = vmatpush.msra.mxu0 %v21
  %364 = vmatpush.msra.mxu0 %v20
  %365 = vmatpush.msra.mxu0 %v19
  %366 = vmatpush.msra.mxu0 %v18
  %367 = vmatmul.f32.gmra.mxu0 %v349
  %v368 = vpop.f32.mrf.mxu0
  %v369 = vadd.f32 %v26, %v368
  %370 = vdwg.mxu0
  %v371 = vtanh.pop %v369
  %v372 = vmul.f32 %v371, 0.5
  %v373 = vadd.f32 %v372, 0.5
  %v374 = vmul.f32 %v373, %v289
  %376 = vrot.lane.b32.xlu0 %v371, 64
  %v377 = vpop.permute.xlu0 %376
  %v379 = vmul.f32 %v373, %v377
  %381 = vrot.lane.b32.xlu0 %v379, 32
  %v382 = vpop.permute.xlu0 %381
  %v384 = vadd.f32 %v374, %v382
  %v385 = vtanh.pop %v384
  %387 = vrot.lane.b32.xlu0 %v385, 64
  %v388 = vpop.permute.xlu0 %387
  %v390 = vmul.f32 %v373, %v388
  %v391 = vsel %vm107, %v341, 0
  %393 = vmatpush.msra.mxu0 0.0
  %394 = vmatpush.msra.mxu0 0.0
  %395 = vmatpush.msra.mxu0 0.0
  %396 = vmatpush.msra.mxu0 0.0
  %397 = vmatpush.msra.mxu0 0.0
  %398 = vmatpush.msra.mxu0 0.0
  %399 = vmatpush.msra.mxu0 0.0
  %400 = vmatpush.msra.mxu0 0.0
  %401 = vmatpush.msra.mxu0 0.0
  %402 = vmatpush.msra.mxu0 0.0
  %403 = vmatpush.msra.mxu0 0.0
  %404 = vmatpush.msra.mxu0 0.0
  %405 = vmatpush.msra.mxu0 %v16
  %406 = vmatpush.msra.mxu0 %v15
  %407 = vmatpush.msra.mxu0 %v14
  %408 = vmatpush.msra.mxu0 %v13
  %409 = vmatmul.f32.gmra.mxu0 %v391
  %v410 = vpop.f32.mrf.mxu0
  %v411 = vadd.f32 0.0, %v410
  %412 = vdwg.mxu0
  %v413 = vadd.f32 %v93, %v411
  %v414 = vtanh.pop %v413
  %v415 = vmul.f32 %v414, 0.5
  %v416 = vadd.f32 %v415, 0.5
  %v417 = vmul.f32 %v416, %v332
  %419 = vrot.lane.b32.xlu0 %v414, 64
  %v420 = vpop.permute.xlu0 %419
  %v422 = vmul.f32 %v416, %v420
  %424 = vrot.lane.b32.xlu0 %v422, 32
  %v425 = vpop.permute.xlu0 %424
  %v427 = vadd.f32 %v417, %v425
  %v428 = vtanh.pop %v427
  %430 = vrot.lane.b32.xlu0 %v428, 64
  %v431 = vpop.permute.xlu0 %430
  %v433 = vmul.f32 %v416, %v431
  %435 = vrot.lane.b32.xlu0 %v433, 32
  %v436 = vpop.permute.xlu0 %435
  %439 = vrot.lane.b32.xlu0 %v390, 64
  %v440 = vpop.permute.xlu0 %439
  %v442 = vsel %vm107, %v436, %v440
  %v444 = vsel %vm157, %v442, 0
  %446 = vmatpush.msra.mxu0 0.0
  %447 = vmatpush.msra.mxu0 0.0
  %448 = vmatpush.msra.mxu0 0.0
  %449 = vmatpush.msra.mxu0 0.0
  %450 = vmatpush.msra.mxu0 0.0
  %451 = vmatpush.msra.mxu0 0.0
  %452 = vmatpush.msra.mxu0 0.0
  %453 = vmatpush.msra.mxu0 0.0
  %454 = vmatpush.msra.mxu0 %v25
  %455 = vmatpush.msra.mxu0 %v24
  %456 = vmatpush.msra.mxu0 %v23
  %457 = vmatpush.msra.mxu0 %v22
  %458 = vmatpush.msra.mxu0 %v21
  %459 = vmatpush.msra.mxu0 %v20
  %460 = vmatpush.msra.mxu0 %v19
  %461 = vmatpush.msra.mxu0 %v18
  %462 = vmatmul.f32.gmra.mxu0 %v444
  %v463 = vpop.f32.mrf.mxu0
  %v464 = vadd.f32 %v26, %v463
  %465 = vdwg.mxu0
  %v466 = vtanh.pop %v464
  %v467 = vmul.f32 %v466, 0.5
  %v468 = vadd.f32 %v467, 0.5
  %v469 = vmul.f32 %v468, %v384
  %471 = vrot.lane.b32.xlu0 %v466, 64
  %v472 = vpop.permute.xlu0 %471
  %v474 = vmul.f32 %v468, %v472
  %476 = vrot.lane.b32.xlu0 %v474, 32
  %v477 = vpop.permute.xlu0 %476
  %v479 = vadd.f32 %v469, %v477
  %v480 = vtanh.pop %v479
  %482 = vrot.lane.b32.xlu0 %v480, 64
  %v483 = vpop.permute.xlu0 %482
  %v485 = vmul.f32 %v468, %v483
  %v486 = vsel %vm107, %v436, 0
  %488 = vmatpush.msra.mxu0 0.0
  %489 = vmatpush.msra.mxu0 0.0
  %490 = vmatpush.msra.mxu0 0.0
  %491 = vmatpush.msra.mxu0 0.0
  %492 = vmatpush.msra.mxu0 0.0
  %493 = vmatpush.msra.mxu0 0.0
  %494 = vmatpush.msra.mxu0 0.0
  %495 = vmatpush.msra.mxu0 0.0
  %496 = vmatpush.msra.mxu0 0.0
  %497 = vmatpush.msra.mxu0 0.0
  %498 = vmatpush.msra.mxu0 0.0
  %499 = vmatpush.msra.mxu0 0.0
  %500 = vmatpush.msra.mxu0 %v16
  %501 = vmatpush.msra.mxu0 %v15
  %502 = vmatpush.msra.mxu0 %v14
  %503 = vmatpush.msra.mxu0 %v13
  %504 = vmatmul.f32.gmra.mxu0 %v486
  %v505 = vpop.f32.mrf.mxu0
  %v506 = vadd.f32 0.0, %v505
  %507 = vdwg.mxu0
  %v508 = vadd.f32 %v96, %v506
  %v509 = vtanh.pop %v508
  %v510 = vmul.f32 %v509, 0.5
  %v511 = vadd.f32 %v510, 0.5
  %v512 = vmul.f32 %v511, %v427
  %514 = vrot.lane.b32.xlu0 %v509, 64
  %v515 = vpop.permute.xlu0 %514
  %v517 = vmul.f32 %v511, %v515
  %519 = vrot.lane.b32.xlu0 %v517, 32
  %v520 = vpop.permute.xlu0 %519
  %v522 = vadd.f32 %v512, %v520
  %v523 = vtanh.pop %v522
  %525 = vrot.lane.b32.xlu0 %v523, 64
  %v526 = vpop.permute.xlu0 %525
  %v528 = vmul.f32 %v511, %v526
  %530 = vrot.lane.b32.xlu0 %v528, 32
  %v531 = vpop.permute.xlu0 %530
  %534 = vrot.lane.b32.xlu0 %v485, 64
  %v535 = vpop.permute.xlu0 %534
  %v537 = vsel %vm107, %v531, %v535
  %v539 = vsel %vm157, %v537, 0
  %541 = vmatpush.msra.mxu0 0.0
  %542 = vmatpush.msra.mxu0 0.0
  %543 = vmatpush.msra.mxu0 0.0
  %544 = vmatpush.msra.mxu0 0.0
  %545 = vmatpush.msra.mxu0 0.0
  %546 = vmatpush.msra.mxu0 0.0
  %547 = vmatpush.msra.mxu0 0.0
  %548 = vmatpush.msra.mxu0 0.0
  %549 = vmatpush.msra.mxu0 %v25
  %550 = vmatpush.msra.mxu0 %v24
  %551 = vmatpush.msra.mxu0 %v23
  %552 = vmatpush.msra.mxu0 %v22
  %553 = vmatpush.msra.mxu0 %v21
  %554 = vmatpush.msra.mxu0 %v20
  %555 = vmatpush.msra.mxu0 %v19
  %556 = vmatpush.msra.mxu0 %v18
  %557 = vmatmul.f32.gmra.mxu0 %v539
  %v558 = vpop.f32.mrf.mxu0
  %v559 = vadd.f32 %v26, %v558
  %560 = vdwg.mxu0
  %v561 = vtanh.pop %v559
  %v562 = vmul.f32 %v561, 0.5
  %v563 = vadd.f32 %v562, 0.5
  %v564 = vmul.f32 %v563, %v479
  %566 = vrot.lane.b32.xlu0 %v561, 64
  %v567 = vpop.permute.xlu0 %566
  %v569 = vmul.f32 %v563, %v567
  %571 = vrot.lane.b32.xlu0 %v569, 32
  %v572 = vpop.permute.xlu0 %571
  %v574 = vadd.f32 %v564, %v572
  %v575 = vtanh.pop %v574
  %577 = vrot.lane.b32.xlu0 %v575, 64
  %v578 = vpop.permute.xlu0 %577
  %v580 = vmul.f32 %v563, %v578
  %v581 = vsel %vm107, %v531, 0
  %583 = vmatpush.msra.mxu0 0.0
  %584 = vmatpush.msra.mxu0 0.0
  %585 = vmatpush.msra.mxu0 0.0
  %586 = vmatpush.msra.mxu0 0.0
  %587 = vmatpush.msra.mxu0 0.0
  %588 = vmatpush.msra.mxu0 0.0
  %589 = vmatpush.msra.mxu0 0.0
  %590 = vmatpush.msra.mxu0 0.0
  %591 = vmatpush.msra.mxu0 0.0
  %592 = vmatpush.msra.mxu0 0.0
  %593 = vmatpush.msra.mxu0 0.0
  %594 = vmatpush.msra.mxu0 0.0
  %595 = vmatpush.msra.mxu0 %v16
  %596 = vmatpush.msra.mxu0 %v15
  %597 = vmatpush.msra.mxu0 %v14
  %598 = vmatpush.msra.mxu0 %v13
  %599 = vmatmul.f32.gmra.mxu0 %v581
  %v600 = vpop.f32.mrf.mxu0
  %v601 = vadd.f32 0.0, %v600
  %602 = vdwg.mxu0
  %v603 = vadd.f32 %v99, %v601
  %v604 = vtanh.pop %v603
  %v605 = vmul.f32 %v604, 0.5
  %v606 = vadd.f32 %v605, 0.5
  %v607 = vmul.f32 %v606, %v522
  %609 = vrot.lane.b32.xlu0 %v604, 64
  %v610 = vpop.permute.xlu0 %609
  %v612 = vmul.f32 %v606, %v610
  %614 = vrot.lane.b32.xlu0 %v612, 32
  %v615 = vpop.permute.xlu0 %614
  %v617 = vadd.f32 %v607, %v615
  %v618 = vtanh.pop %v617
  %620 = vrot.lane.b32.xlu0 %v618, 64
  %v621 = vpop.permute.xlu0 %620
  %v623 = vmul.f32 %v606, %v621
  %625 = vrot.lane.b32.xlu0 %v623, 32
  %v626 = vpop.permute.xlu0 %625
  %629 = vrot.lane.b32.xlu0 %v580, 64
  %v630 = vpop.permute.xlu0 %629
  %v632 = vsel %vm107, %v626, %v630
  %v634 = vsel %vm157, %v632, 0
  %636 = vmatpush.msra.mxu0 0.0
  %637 = vmatpush.msra.mxu0 0.0
  %638 = vmatpush.msra.mxu0 0.0
  %639 = vmatpush.msra.mxu0 0.0
  %640 = vmatpush.msra.mxu0 0.0
  %641 = vmatpush.msra.mxu0 0.0
  %642 = vmatpush.msra.mxu0 0.0
  %643 = vmatpush.msra.mxu0 0.0
  %644 = vmatpush.msra.mxu0 %v25
  %645 = vmatpush.msra.mxu0 %v24
  %646 = vmatpush.msra.mxu0 %v23
  %647 = vmatpush.msra.mxu0 %v22
  %648 = vmatpush.msra.mxu0 %v21
  %649 = vmatpush.msra.mxu0 %v20
  %650 = vmatpush.msra.mxu0 %v19
  %651 = vmatpush.msra.mxu0 %v18
  %652 = vmatmul.f32.gmra.mxu0 %v634
  %v653 = vpop.f32.mrf.mxu0
  %v654 = vadd.f32 %v26, %v653
  %655 = vdwg.mxu0
  %v656 = vtanh.pop %v654
  %v657 = vmul.f32 %v656, 0.5
  %v658 = vadd.f32 %v657, 0.5
  %v659 = vmul.f32 %v658, %v574
  %661 = vrot.lane.b32.xlu0 %v656, 64
  %v662 = vpop.permute.xlu0 %661
  %v664 = vmul.f32 %v658, %v662
  %666 = vrot.lane.b32.xlu0 %v664, 32
  %v667 = vpop.permute.xlu0 %666
  %v669 = vadd.f32 %v659, %v667
  %v670 = vtanh.pop %v669
  %672 = vrot.lane.b32.xlu0 %v670, 64
  %v673 = vpop.permute.xlu0 %672
  %v675 = vmul.f32 %v658, %v673
  %v676 = vsel %vm107, %v626, 0
  %678 = vmatpush.msra.mxu0 0.0
  %679 = vmatpush.msra.mxu0 0.0
  %680 = vmatpush.msra.mxu0 0.0
  %681 = vmatpush.msra.mxu0 0.0
  %682 = vmatpush.msra.mxu0 0.0
  %683 = vmatpush.msra.mxu0 0.0
  %684 = vmatpush.msra.mxu0 0.0
  %685 = vmatpush.msra.mxu0 0.0
  %686 = vmatpush.msra.mxu0 0.0
  %687 = vmatpush.msra.mxu0 0.0
  %688 = vmatpush.msra.mxu0 0.0
  %689 = vmatpush.msra.mxu0 0.0
  %690 = vmatpush.msra.mxu0 %v16
  %691 = vmatpush.msra.mxu0 %v15
  %692 = vmatpush.msra.mxu0 %v14
  %693 = vmatpush.msra.mxu0 %v13
  %694 = vmatmul.f32.gmra.mxu0 %v676
  %v695 = vpop.f32.mrf.mxu0
  %v696 = vadd.f32 0.0, %v695
  %697 = vdwg.mxu0
  %v698 = vadd.f32 %v102, %v696
  %v699 = vtanh.pop %v698
  %v700 = vmul.f32 %v699, 0.5
  %v701 = vadd.f32 %v700, 0.5
  %v702 = vmul.f32 %v701, %v617
  %704 = vrot.lane.b32.xlu0 %v699, 64
  %v705 = vpop.permute.xlu0 %704
  %v707 = vmul.f32 %v701, %v705
  %709 = vrot.lane.b32.xlu0 %v707, 32
  %v710 = vpop.permute.xlu0 %709
  %v712 = vadd.f32 %v702, %v710
  %v713 = vtanh.pop %v712
  %715 = vrot.lane.b32.xlu0 %v713, 64
  %v716 = vpop.permute.xlu0 %715
  %v718 = vmul.f32 %v701, %v716
  %720 = vrot.lane.b32.xlu0 %v718, 32
  %v721 = vpop.permute.xlu0 %720
  %724 = vrot.lane.b32.xlu0 %v675, 64
  %v725 = vpop.permute.xlu0 %724
  %v727 = vsel %vm107, %v721, %v725
  %v729 = vsel %vm157, %v727, 0
  %731 = vmatpush.msra.mxu0 0.0
  %732 = vmatpush.msra.mxu0 0.0
  %733 = vmatpush.msra.mxu0 0.0
  %734 = vmatpush.msra.mxu0 0.0
  %735 = vmatpush.msra.mxu0 0.0
  %736 = vmatpush.msra.mxu0 0.0
  %737 = vmatpush.msra.mxu0 0.0
  %738 = vmatpush.msra.mxu0 0.0
  %739 = vmatpush.msra.mxu0 %v25
  %740 = vmatpush.msra.mxu0 %v24
  %741 = vmatpush.msra.mxu0 %v23
  %742 = vmatpush.msra.mxu0 %v22
  %743 = vmatpush.msra.mxu0 %v21
  %744 = vmatpush.msra.mxu0 %v20
  %745 = vmatpush.msra.mxu0 %v19
  %746 = vmatpush.msra.mxu0 %v18
  %747 = vmatmul.f32.gmra.mxu0 %v729
  %v748 = vpop.f32.mrf.mxu0
  %v749 = vadd.f32 %v26, %v748
  %750 = vdwg.mxu0
  %v751 = vtanh.pop %v749
  %v752 = vmul.f32 %v751, 0.5
  %v753 = vadd.f32 %v752, 0.5
  %v754 = vmul.f32 %v753, %v669
  %756 = vrot.lane.b32.xlu0 %v751, 64
  %v757 = vpop.permute.xlu0 %756
  %v759 = vmul.f32 %v753, %v757
  %761 = vrot.lane.b32.xlu0 %v759, 32
  %v762 = vpop.permute.xlu0 %761
  %v764 = vadd.f32 %v754, %v762
  %v765 = vtanh.pop %v764
  %767 = vrot.lane.b32.xlu0 %v765, 64
  %v768 = vpop.permute.xlu0 %767
  %v770 = vmul.f32 %v753, %v768
  %v771 = vsel %vm107, %v721, 0
  %773 = vmatpush.msra.mxu0 0.0
  %774 = vmatpush.msra.mxu0 0.0
  %775 = vmatpush.msra.mxu0 0.0
  %776 = vmatpush.msra.mxu0 0.0
  %777 = vmatpush.msra.mxu0 0.0
  %778 = vmatpush.msra.mxu0 0.0
  %779 = vmatpush.msra.mxu0 0.0
  %780 = vmatpush.msra.mxu0 0.0
  %781 = vmatpush.msra.mxu0 0.0
  %782 = vmatpush.msra.mxu0 0.0
  %783 = vmatpush.msra.mxu0 0.0
  %784 = vmatpush.msra.mxu0 0.0
  %785 = vmatpush.msra.mxu0 %v16
  %786 = vmatpush.msra.mxu0 %v15
  %787 = vmatpush.msra.mxu0 %v14
  %788 = vmatpush.msra.mxu0 %v13
  %789 = vmatmul.f32.gmra.mxu0 %v771
  %v790 = vpop.f32.mrf.mxu0
  %v791 = vadd.f32 0.0, %v790
  %792 = vdwg.mxu0
  %v793 = vadd.f32 %v105, %v791
  %v794 = vtanh.pop %v793
  %v795 = vmul.f32 %v794, 0.5
  %v796 = vadd.f32 %v795, 0.5
  %v797 = vmul.f32 %v796, %v712
  %799 = vrot.lane.b32.xlu0 %v794, 64
  %v800 = vpop.permute.xlu0 %799
  %v802 = vmul.f32 %v796, %v800
  %804 = vrot.lane.b32.xlu0 %v802, 32
  %v805 = vpop.permute.xlu0 %804
  %v807 = vadd.f32 %v797, %v805
  %v808 = vtanh.pop %v807
  %810 = vrot.lane.b32.xlu0 %v808, 64
  %v811 = vpop.permute.xlu0 %810
  %v813 = vmul.f32 %v796, %v811
  %815 = vrot.lane.b32.xlu0 %v813, 32
  %v816 = vpop.permute.xlu0 %815
  %819 = vrot.lane.b32.xlu0 %v770, 64
  %v820 = vpop.permute.xlu0 %819
  %v822 = vsel %vm107, %v816, %v820
  %v824 = vsel %vm157, %v822, 0
  %826 = vmatpush.msra.mxu0 0.0
  %827 = vmatpush.msra.mxu0 0.0
  %828 = vmatpush.msra.mxu0 0.0
  %829 = vmatpush.msra.mxu0 0.0
  %830 = vmatpush.msra.mxu0 0.0
  %831 = vmatpush.msra.mxu0 0.0
  %832 = vmatpush.msra.mxu0 0.0
  %833 = vmatpush.msra.mxu0 0.0
  %834 = vmatpush.msra.mxu0 %v25
  %835 = vmatpush.msra.mxu0 %v24
  %836 = vmatpush.msra.mxu0 %v23
  %837 = vmatpush.msra.mxu0 %v22
  %838 = vmatpush.msra.mxu0 %v21
  %839 = vmatpush.msra.mxu0 %v20
  %840 = vmatpush.msra.mxu0 %v19
  %841 = vmatpush.msra.mxu0 %v18
  %842 = vmatmul.f32.gmra.mxu0 %v824
  %v843 = vpop.f32.mrf.mxu0
  %v844 = vadd.f32 %v26, %v843
  %845 = vdwg.mxu0
  %v846 = vtanh.pop %v844
  %v847 = vmul.f32 %v846, 0.5
  %v848 = vadd.f32 %v847, 0.5
  %v849 = vmul.f32 %v848, %v764
  %851 = vrot.lane.b32.xlu0 %v846, 64
  %v852 = vpop.permute.xlu0 %851
  %v854 = vmul.f32 %v848, %v852
  %856 = vrot.lane.b32.xlu0 %v854, 32
  %v857 = vpop.permute.xlu0 %856
  %v859 = vadd.f32 %v849, %v857
  %v860 = vtanh.pop %v859
  %862 = vrot.lane.b32.xlu0 %v860, 64
  %v863 = vpop.permute.xlu0 %862
  %v865 = vmul.f32 %v848, %v863
  %v866 = vperm.slane %v31, 0
  %868 = vrot.lane.b32.xlu0 %v200, 32
  %v869 = vpop.permute.xlu0 %868
  %870 = vrot.lane.b32.xlu0 %v295, 32
  %v871 = vpop.permute.xlu0 %870
  %872 = vrot.lane.b32.xlu0 %v390, 32
  %v873 = vpop.permute.xlu0 %872
  %874 = vrot.lane.b32.xlu0 %v485, 32
  %v875 = vpop.permute.xlu0 %874
  %876 = vrot.lane.b32.xlu0 %v580, 32
  %v877 = vpop.permute.xlu0 %876
  %878 = vrot.lane.b32.xlu0 %v675, 32
  %v879 = vpop.permute.xlu0 %878
  %880 = vrot.lane.b32.xlu0 %v770, 32
  %v881 = vpop.permute.xlu0 %880
  %882 = vrot.lane.b32.xlu0 %v865, 32
  %v883 = vpop.permute.xlu0 %882
  %v884 = vsel %vm107, %v869, 0
  %v886 = vsel %vm107, %v871, 0
  %v888 = vsel %vm107, %v873, 0
  %v890 = vsel %vm107, %v875, 0
  %v892 = vsel %vm107, %v877, 0
  %v894 = vsel %vm107, %v879, 0
  %v896 = vsel %vm107, %v881, 0
  %v898 = vsel %vm107, %v883, 0
  %900 = vmatpush.msra.mxu0 0.0
  %901 = vmatpush.msra.mxu0 0.0
  %902 = vmatpush.msra.mxu0 0.0
  %903 = vmatpush.msra.mxu0 0.0
  %904 = vmatpush.msra.mxu0 0.0
  %905 = vmatpush.msra.mxu0 0.0
  %906 = vmatpush.msra.mxu0 0.0
  %907 = vmatpush.msra.mxu0 0.0
  %908 = vmatpush.msra.mxu0 0.0
  %909 = vmatpush.msra.mxu0 0.0
  %910 = vmatpush.msra.mxu0 0.0
  %911 = vmatpush.msra.mxu0 0.0
  %912 = vmatpush.msra.mxu0 %v30
  %913 = vmatpush.msra.mxu0 %v29
  %914 = vmatpush.msra.mxu0 %v28
  %915 = vmatpush.msra.mxu0 %v27
  %916 = vmatmul.f32.gmra.mxu0 %v884
  %v917 = vpop.f32.mrf.mxu0
  %v918 = vadd.f32 %v866, %v917
  %919 = vmatmul.f32.gmra.mxu0 %v886
  %v920 = vpop.f32.mrf.mxu0
  %v921 = vadd.f32 %v866, %v920
  %922 = vmatmul.f32.gmra.mxu0 %v888
  %v923 = vpop.f32.mrf.mxu0
  %v924 = vadd.f32 %v866, %v923
  %925 = vmatmul.f32.gmra.mxu0 %v890
  %v926 = vpop.f32.mrf.mxu0
  %v927 = vadd.f32 %v866, %v926
  %928 = vmatmul.f32.gmra.mxu0 %v892
  %v929 = vpop.f32.mrf.mxu0
  %v930 = vadd.f32 %v866, %v929
  %931 = vmatmul.f32.gmra.mxu0 %v894
  %v932 = vpop.f32.mrf.mxu0
  %v933 = vadd.f32 %v866, %v932
  %934 = vmatmul.f32.gmra.mxu0 %v896
  %v935 = vpop.f32.mrf.mxu0
  %v936 = vadd.f32 %v866, %v935
  %937 = vmatmul.f32.gmra.mxu0 %v898
  %v938 = vpop.f32.mrf.mxu0
  %v939 = vadd.f32 %v866, %v938
  %940 = vdwg.mxu0
  %941 = vst [vmem:[%s2] sm:$0xff] %v918
  %942 = vst [vmem:[%s2 + $0x8] sm:$0xff] %v921
  %943 = vst [vmem:[%s2 + $0x10] sm:$0xff] %v924
  %944 = vst [vmem:[%s2 + $0x18] sm:$0xff] %v927
  %945 = vst [vmem:[%s2 + $0x20] sm:$0xff] %v930
  %946 = vst [vmem:[%s2 + $0x28] sm:$0xff] %v933
  %947 = vst [vmem:[%s2 + $0x30] sm:$0xff] %v936
  %948 = vst [vmem:[%s2 + $0x38] sm:$0xff] %v939
  // Predicated region
  $region10: #{lstm_reg_forward.1} parent=0 // pred_check
    _
  $region11: #{lstm_reg_forward.1} parent=0 // pred_check_branch
    %950 = sbr.rel (0) target = $region13
  $region12: #{lstm_reg_forward.1} parent=0 // pred_region
    _
  $region13: #{lstm_reg_forward.1} parent=0 // pred_fallthru
    _
  // Predicated region
  $region14: #{lstm_reg_forward.1} parent=0 // pred_check
    _
  $region15: #{lstm_reg_forward.1} parent=0 // pred_check_branch
    %952 = sbr.rel (0) target = $region17
  $region16: #{lstm_reg_forward.1} parent=0 // pred_region
    _
  $region17: #{lstm_reg_forward.1} parent=0 // pred_fallthru
    _

</llo_original>
